<compile_context>
chip_gen: v7x
topology: tpu7x:2x2x1
jax: 0.10.0
libtpu: 0.0.40
codegen_flags: <defaults>
</compile_context>

<pallas_src>
import functools

import jax
import jax.numpy as jnp
from jax.experimental import pallas as pl
from jax.experimental.pallas import tpu as pltpu


# ---------------------------------------------------------------------------
# Pallas kernel: per-point shared MLP (3 x conv1d(k=1)) + global max over points
# ---------------------------------------------------------------------------
def _make_point_mlp_kernel(relu_last, point_tile):
    def kernel(x_ref, w1_ref, b1_ref, w2_ref, b2_ref, w3_ref, b3_ref,
               out_ref, feat_ref):
        n = pl.program_id(1)

        # Reset the running-max accumulator at the first point tile of each batch.
        @pl.when(n == 0)
        def _():
            feat_ref[...] = jnp.full(feat_ref.shape, -jnp.inf, feat_ref.dtype)

        x = x_ref[0]                                            # (TN, Cin)
        h = jnp.dot(x, w1_ref[...], preferred_element_type=jnp.float32) + b1_ref[...]
        h = jnp.maximum(h, 0.0)
        h = jnp.dot(h.astype(w2_ref.dtype), w2_ref[...],
                    preferred_element_type=jnp.float32) + b2_ref[...]
        h = jnp.maximum(h, 0.0)
        h = jnp.dot(h.astype(w3_ref.dtype), w3_ref[...],
                    preferred_element_type=jnp.float32) + b3_ref[...]
        if relu_last:
            h = jnp.maximum(h, 0.0)                             # (TN, C3) f32

        # Partial max into an (8, C3) accumulator: per-tile work is element-wise
        # VPU max only; the cross-sublane (XLU) reduce happens once per batch.
        c3 = h.shape[-1]
        if point_tile % 8 == 0:
            part = jnp.max(h.reshape(point_tile // 8, 8, c3), axis=0)   # (8, C3)
        else:
            part = jnp.max(h, axis=0, keepdims=True)                    # (1, C3)
        feat_ref[...] = jnp.maximum(feat_ref[...], part)

        # Final sublane reduce -> lane-dense (1, 1, C3) output block.
        @pl.when(n == pl.num_programs(1) - 1)
        def _():
            out_ref[...] = jnp.max(feat_ref[...], axis=0, keepdims=True).reshape(1, 1, c3)

    return kernel


def _pick_point_tile(n_points, point_tile):
    """Largest multiple-of-8 divisor of n_points that is <= point_tile."""
    if n_points <= point_tile:
        return n_points
    t = (point_tile // 8) * 8
    while t >= 8:
        if n_points % t == 0:
            return t
        t -= 8
    return n_points   # fall back to a single tile covering all points


def point_mlp_maxpool(x, conv_params, *, relu_last, point_tile=512,
                      compute_dtype=jnp.float32):
    """relu(x@W1+b1) -> relu(@W2+b2) -> (@W3+b3)[->relu] -> max over points.

    x: (B, N, Cin) points-major.  Returns the pooled (B, C3) feature in float32.
    """
    B, N, Cin = x.shape
    w1, b1, w2, b2, w3, b3 = conv_params
    c1, c2, c3 = w1.shape[1], w2.shape[1], w3.shape[1]

    tn = _pick_point_tile(N, point_tile)
    grid = (B, N // tn)

    # Weights/activations in compute dtype (set bf16 on v6e/v7x); biases stay f32
    # and are added onto the f32 accumulators.
    xc = x.astype(compute_dtype)
    w1c, w2c, w3c = (w.astype(compute_dtype) for w in (w1, w2, w3))
    b1r, b2r, b3r = (b.reshape(1, -1).astype(jnp.float32) for b in (b1, b2, b3))

    def fixed_spec(shape):
        zeros = (0,) * len(shape)
        return pl.BlockSpec(shape, lambda b, n, _z=zeros: _z)

    itemsize = jnp.dtype(compute_dtype).itemsize
    flops = 2 * B * N * (Cin * c1 + c1 * c2 + c2 * c3)
    bytes_accessed = (x.size * itemsize
                      + (w1.size + w2.size + w3.size) * itemsize
                      + (b1.size + b2.size + b3.size) * 4
                      + B * c3 * 4)

    out = pl.pallas_call(
        _make_point_mlp_kernel(relu_last, tn),
        out_shape=jax.ShapeDtypeStruct((B, 1, c3), jnp.float32),
        grid_spec=pltpu.PrefetchScalarGridSpec(
            num_scalar_prefetch=0,
            grid=grid,
            in_specs=[
                pl.BlockSpec((1, tn, Cin), lambda b, n: (b, n, 0)),
                fixed_spec(w1c.shape), fixed_spec(b1r.shape),
                fixed_spec(w2c.shape), fixed_spec(b2r.shape),
                fixed_spec(w3c.shape), fixed_spec(b3r.shape),
            ],
            out_specs=pl.BlockSpec((1, 1, c3), lambda b, n: (b, 0, 0)),
            scratch_shapes=[pltpu.VMEM((8, c3), jnp.float32)],
        ),
        compiler_params=pltpu.CompilerParams(
            dimension_semantics=("parallel", "arbitrary")),
        cost_estimate=pl.CostEstimate(
            flops=flops, transcendentals=0, bytes_accessed=bytes_accessed),
    )(xc, w1c, b1r, w2c, b2r, w3c, b3r)
    return out.reshape(B, c3)


# ---------------------------------------------------------------------------
# Full PointNetCls forward (heads / bmm / log_softmax as batched XLA ops)
# ---------------------------------------------------------------------------
def _fold_bn(w, b, bn, eps=1e-5):
    gamma, beta, mean, var = bn
    scale = gamma / jnp.sqrt(var + eps)
    return w * scale[None, :], (b - mean) * scale + beta


def pointnet_cls_forward(x, params, *, point_tile=512, compute_dtype=jnp.float32):
    """PointNetCls.forward: x (B, N, 3) -> (log_softmax(logits), trans)."""
    # ---- STN3d -------------------------------------------------------------
    stn = params["stn"]
    f = point_mlp_maxpool(x, stn["conv"], relu_last=True,
                          point_tile=point_tile, compute_dtype=compute_dtype)
    wf1, bf1, wf2, bf2, wf3, bf3 = stn["fc"]
    g = jax.nn.relu(f @ wf1 + bf1)
    g = jax.nn.relu(g @ wf2 + bf2)
    g = g @ wf3 + bf3                                           # (B, 9)
    iden = jnp.eye(3, dtype=g.dtype).reshape(1, 9)
    trans = (g + iden).reshape(-1, 3, 3)                        # (B, 3, 3)

    # ---- PointNetfeat (global_feat=True, trans=True) -------------------------
    xt = jnp.einsum("bnd,bde->bne", x, trans)                   # torch.bmm(x, trans)
    w1, b1, w2, b2, w3, b3 = params["feat"]["conv"]
    bn1, bn2, bn3 = params["feat"]["bn"]
    fw1, fb1 = _fold_bn(w1, b1, bn1)
    fw2, fb2 = _fold_bn(w2, b2, bn2)
    fw3, fb3 = _fold_bn(w3, b3, bn3)
    # Note: the PyTorch module has NO ReLU after bn3 before the max pool.
    gfeat = point_mlp_maxpool(xt, (fw1, fb1, fw2, fb2, fw3, fb3),
                              relu_last=False, point_tile=point_tile,
                              compute_dtype=compute_dtype)       # (B, 1024)

    # ---- classification head -------------------------------------------------
    wc1, bc1, wc2, bc2, wc3, bc3 = params["cls"]["fc"]
    h = jax.nn.relu(gfeat @ wc1 + bc1)
    h = jax.nn.relu(h @ wc2 + bc2)
    logits = h @ wc3 + bc3                                       # (B, k)
    return jax.nn.log_softmax(logits, axis=-1), trans


# ---------------------------------------------------------------------------
# Plain-JAX reference mirroring the PyTorch forward (eval-mode BatchNorm)
# ---------------------------------------------------------------------------
def pointnet_cls_ref(x, params):
    def pmlp(h, conv, bns, relu_last):
        w1, b1, w2, b2, w3, b3 = conv
        for i, (w, b) in enumerate(((w1, b1), (w2, b2), (w3, b3))):
            h = h @ w + b
            if bns is not None:
                gamma, beta, mean, var = bns[i]
                h = (h - mean) / jnp.sqrt(var + 1e-5) * gamma + beta
            if i < 2 or relu_last:
                h = jax.nn.relu(h)
        return jnp.max(h, axis=1)

    stn = params["stn"]
    f = pmlp(x, stn["conv"], None, relu_last=True)
    wf1, bf1, wf2, bf2, wf3, bf3 = stn["fc"]
    g = jax.nn.relu(f @ wf1 + bf1)
    g = jax.nn.relu(g @ wf2 + bf2)
    g = g @ wf3 + bf3
    iden = jnp.array([1, 0, 0, 0, 1, 0, 0, 0, 1], jnp.float32)
    trans = (g + iden).reshape(-1, 3, 3)

    xt = jnp.einsum("bnd,bde->bne", x, trans)
    feat = pmlp(xt, params["feat"]["conv"], params["feat"]["bn"], relu_last=False)

    wc1, bc1, wc2, bc2, wc3, bc3 = params["cls"]["fc"]
    h = jax.nn.relu(feat @ wc1 + bc1)
    h = jax.nn.relu(h @ wc2 + bc2)
    logits = h @ wc3 + bc3
    return jax.nn.log_softmax(logits, axis=-1), trans


# ---------------------------------------------------------------------------
# Deterministic synthetic parameters (same fan-in/out as the PyTorch module)
# ---------------------------------------------------------------------------
def init_params(key, k_classes=2):
    kit = iter(jax.random.split(key, 40))

    def linear(fin, fout):
        kw, kb = next(kit), next(kit)
        s = 1.0 / jnp.sqrt(jnp.float32(fin))
        w = jax.random.uniform(kw, (fin, fout), jnp.float32, -s, s)
        b = jax.random.uniform(kb, (fout,), jnp.float32, -s, s)
        return w, b

    def bn(c):
        kg, kb, km, kv = next(kit), next(kit), next(kit), next(kit)
        gamma = 1.0 + 0.1 * jax.random.normal(kg, (c,), jnp.float32)
        beta = 0.1 * jax.random.normal(kb, (c,), jnp.float32)
        mean = 0.1 * jax.random.normal(km, (c,), jnp.float32)
        var = 0.5 + jax.nn.softplus(jax.random.normal(kv, (c,), jnp.float32))
        return gamma, beta, mean, var

    conv_dims = [(3, 64), (64, 128), (128, 1024)]

    stn_conv = []
    for fin, fout in conv_dims:
        stn_conv += list(linear(fin, fout))
    stn_fc = []
    for fin, fout in [(1024, 512), (512, 256), (256, 9)]:
        stn_fc += list(linear(fin, fout))

    feat_conv, feat_bn = [], []
    for fin, fout in conv_dims:
        feat_conv += list(linear(fin, fout))
        feat_bn.append(bn(fout))

    cls_fc = []
    for fin, fout in [(1024, 512), (512, 256), (256, k_classes)]:
        cls_fc += list(linear(fin, fout))

    return {
        "stn": {"conv": tuple(stn_conv), "fc": tuple(stn_fc)},
        "feat": {"conv": tuple(feat_conv), "bn": tuple(feat_bn)},
        "cls": {"fc": tuple(cls_fc)},
    }


if __name__ == "__main__":
    key = jax.random.PRNGKey(0)
    kx, kp = jax.random.split(key)

    B, N = 2, 16                      # small demo shapes: batch=2, 16 points, 3 coords
    x = jax.random.normal(kx, (B, N, 3), dtype=jnp.float32)
    params = init_params(kp, k_classes=2)

    fwd = jax.jit(functools.partial(pointnet_cls_forward, point_tile=512))
    log_probs, trans = jax.block_until_ready(fwd(x, params))

    ref_lp, ref_tr = pointnet_cls_ref(x, params)
    assert log_probs.shape == (B, 2) and trans.shape == (B, 3, 3)
    err_tr = jnp.max(jnp.abs(trans - ref_tr))
    err_lp = jnp.max(jnp.abs(log_probs - ref_lp))
    assert jnp.allclose(trans, ref_tr, rtol=2e-4, atol=2e-4), f"trans mismatch: {err_tr}"
    assert jnp.allclose(log_probs, ref_lp, rtol=2e-4, atol=2e-4), f"log_probs mismatch: {err_lp}"

    print("KERNEL_OK")
</pallas_src>

<mosaic_0001>
module attributes {stable_mosaic.version = 11 : i64} {
  func.func @kernel(%arg0: i32, %arg1: i32, %arg2: memref<1x16x3xf32, #tpu.memory_space<vmem>>, %arg3: memref<3x64xf32, #tpu.memory_space<vmem>>, %arg4: memref<1x64xf32, #tpu.memory_space<vmem>>, %arg5: memref<64x128xf32, #tpu.memory_space<vmem>>, %arg6: memref<1x128xf32, #tpu.memory_space<vmem>>, %arg7: memref<128x1024xf32, #tpu.memory_space<vmem>>, %arg8: memref<1x1024xf32, #tpu.memory_space<vmem>>, %arg9: memref<1x1x1024xf32, #tpu.memory_space<vmem>>, %arg10: memref<8x1024xf32, #tpu.memory_space<vmem>>) attributes {dimension_semantics = [#tpu.dimension_semantics<parallel>, #tpu.dimension_semantics<arbitrary>], iteration_bounds = array<i64: 2, 1>, scalar_prefetch = 0 : i64, scratch_operands = 1 : i64, tpu.core_type = #tpu.core_type<tc>, window_params = [{transform_indices = @transform_0, window_bounds = array<i64: 1, 16, 3>}, {pipeline_mode = #tpu.pipeline_mode<synchronous>, transform_indices = @transform_1, window_bounds = array<i64: 3, 64>}, {pipeline_mode = #tpu.pipeline_mode<synchronous>, transform_indices = @transform_2, window_bounds = array<i64: 1, 64>}, {pipeline_mode = #tpu.pipeline_mode<synchronous>, transform_indices = @transform_3, window_bounds = array<i64: 64, 128>}, {pipeline_mode = #tpu.pipeline_mode<synchronous>, transform_indices = @transform_4, window_bounds = array<i64: 1, 128>}, {pipeline_mode = #tpu.pipeline_mode<synchronous>, transform_indices = @transform_5, window_bounds = array<i64: 128, 1024>}, {pipeline_mode = #tpu.pipeline_mode<synchronous>, transform_indices = @transform_6, window_bounds = array<i64: 1, 1024>}, {transform_indices = @transform_7, window_bounds = array<i64: 1, 1, 1024>}]} {
    %c0_i32 = arith.constant 0 : i32
    %0 = arith.cmpi eq, %arg1, %c0_i32 : i32
    %1 = arith.extui %0 : i1 to i32
    %c0_i32_0 = arith.constant 0 : i32
    %2 = arith.cmpi ne, %1, %c0_i32_0 : i32
    scf.if %2 {
      %cst_27 = arith.constant 0xFF800000 : f32
      %34 = vector.broadcast %cst_27 : f32 to vector<8x1024xf32>
      %c0_28 = arith.constant 0 : index
      %c0_29 = arith.constant 0 : index
      %35 = vector.load %arg10[%c0_28, %c0_29] : memref<8x1024xf32, #tpu.memory_space<vmem>>, vector<8x1024xf32>
      tpu.vector_store %arg10[%c0_28, %c0_29], %34 {strides = array<i32>} : memref<8x1024xf32, #tpu.memory_space<vmem>>, vector<8x1024xf32>,
    } else {
    }
    %c0 = arith.constant 0 : index
    %c0_1 = arith.constant 0 : index
    %c0_2 = arith.constant 0 : index
    %3 = vector.load %arg2[%c0, %c0_1, %c0_2] : memref<1x16x3xf32, #tpu.memory_space<vmem>>, vector<1x16x3xf32>
    %4 = vector.shape_cast %3 : vector<1x16x3xf32> to vector<16x3xf32>
    %c0_3 = arith.constant 0 : index
    %c0_4 = arith.constant 0 : index
    %5 = vector.load %arg3[%c0_3, %c0_4] : memref<3x64xf32, #tpu.memory_space<vmem>>, vector<3x64xf32>
    %cst = arith.constant dense<0.000000e+00> : vector<16x64xf32>
    %6 = tpu.matmul %4, %5, %cst {dimension_numbers = #tpu.dot_dimension_numbers<[1], [0], [0], [1], [0, 0, 1, 1], [], []>} : vector<16x3xf32>, vector<3x64xf32>, vector<16x64xf32> -> vector<16x64xf32>
    %c0_5 = arith.constant 0 : index
    %c0_6 = arith.constant 0 : index
    %7 = vector.load %arg4[%c0_5, %c0_6] : memref<1x64xf32, #tpu.memory_space<vmem>>, vector<1x64xf32>
    %8 = vector.broadcast %7 : vector<1x64xf32> to vector<16x64xf32>
    %9 = arith.addf %6, %8 : vector<16x64xf32>
    %cst_7 = arith.constant 0.000000e+00 : f32
    %10 = vector.broadcast %cst_7 : f32 to vector<16x64xf32>
    %11 = arith.maximumf %9, %10 : vector<16x64xf32>
    %c0_8 = arith.constant 0 : index
    %c0_9 = arith.constant 0 : index
    %12 = vector.load %arg5[%c0_8, %c0_9] : memref<64x128xf32, #tpu.memory_space<vmem>>, vector<64x128xf32>
    %cst_10 = arith.constant dense<0.000000e+00> : vector<16x128xf32>
    %13 = tpu.matmul %11, %12, %cst_10 {dimension_numbers = #tpu.dot_dimension_numbers<[1], [0], [0], [1], [0, 0, 1, 1], [], []>} : vector<16x64xf32>, vector<64x128xf32>, vector<16x128xf32> -> vector<16x128xf32>
    %c0_11 = arith.constant 0 : index
    %c0_12 = arith.constant 0 : index
    %14 = vector.load %arg6[%c0_11, %c0_12] : memref<1x128xf32, #tpu.memory_space<vmem>>, vector<1x128xf32>
    %15 = vector.broadcast %14 : vector<1x128xf32> to vector<16x128xf32>
    %16 = arith.addf %13, %15 : vector<16x128xf32>
    %cst_13 = arith.constant 0.000000e+00 : f32
    %17 = vector.broadcast %cst_13 : f32 to vector<16x128xf32>
    %18 = arith.maximumf %16, %17 : vector<16x128xf32>
    %c0_14 = arith.constant 0 : index
    %c0_15 = arith.constant 0 : index
    %19 = vector.load %arg7[%c0_14, %c0_15] : memref<128x1024xf32, #tpu.memory_space<vmem>>, vector<128x1024xf32>
    %cst_16 = arith.constant dense<0.000000e+00> : vector<16x1024xf32>
    %20 = tpu.matmul %18, %19, %cst_16 {dimension_numbers = #tpu.dot_dimension_numbers<[1], [0], [0], [1], [0, 0, 1, 1], [], []>} : vector<16x128xf32>, vector<128x1024xf32>, vector<16x1024xf32> -> vector<16x1024xf32>
    %c0_17 = arith.constant 0 : index
    %c0_18 = arith.constant 0 : index
    %21 = vector.load %arg8[%c0_17, %c0_18] : memref<1x1024xf32, #tpu.memory_space<vmem>>, vector<1x1024xf32>
    %22 = vector.broadcast %21 : vector<1x1024xf32> to vector<16x1024xf32>
    %23 = arith.addf %20, %22 : vector<16x1024xf32>
    %cst_19 = arith.constant 0.000000e+00 : f32
    %24 = vector.broadcast %cst_19 : f32 to vector<16x1024xf32>
    %25 = arith.maximumf %23, %24 : vector<16x1024xf32>
    %26 = vector.shape_cast %25 : vector<16x1024xf32> to vector<2x8x1024xf32>
    %cst_20 = arith.constant dense<0xFF800000> : vector<8x1024xf32>
    %27 = vector.multi_reduction <maximumf>, %26, %cst_20 [0] : vector<2x8x1024xf32> to vector<8x1024xf32>
    %c0_21 = arith.constant 0 : index
    %c0_22 = arith.constant 0 : index
    %28 = vector.load %arg10[%c0_21, %c0_22] : memref<8x1024xf32, #tpu.memory_space<vmem>>, vector<8x1024xf32>
    %29 = arith.maximumf %28, %27 : vector<8x1024xf32>
    %c0_23 = arith.constant 0 : index
    %c0_24 = arith.constant 0 : index
    %30 = vector.load %arg10[%c0_23, %c0_24] : memref<8x1024xf32, #tpu.memory_space<vmem>>, vector<8x1024xf32>
    tpu.vector_store %arg10[%c0_23, %c0_24], %29 {strides = array<i32>} : memref<8x1024xf32, #tpu.memory_space<vmem>>, vector<8x1024xf32>,
    %c0_i32_25 = arith.constant 0 : i32
    %31 = arith.cmpi eq, %arg1, %c0_i32_25 : i32
    %32 = arith.extui %31 : i1 to i32
    %c0_i32_26 = arith.constant 0 : i32
    %33 = arith.cmpi ne, %32, %c0_i32_26 : i32
    scf.if %33 {
      %c0_27 = arith.constant 0 : index
      %c0_28 = arith.constant 0 : index
      %34 = vector.load %arg10[%c0_27, %c0_28] : memref<8x1024xf32, #tpu.memory_space<vmem>>, vector<8x1024xf32>
      %cst_29 = arith.constant dense<0xFF800000> : vector<1024xf32>
      %35 = vector.multi_reduction <maximumf>, %34, %cst_29 [0] : vector<8x1024xf32> to vector<1024xf32>
      %36 = vector.shape_cast %35 : vector<1024xf32> to vector<1x1024xf32>
      %37 = vector.shape_cast %36 : vector<1x1024xf32> to vector<1x1x1024xf32>
      %c0_30 = arith.constant 0 : index
      %c0_31 = arith.constant 0 : index
      %c0_32 = arith.constant 0 : index
      %38 = vector.load %arg9[%c0_30, %c0_31, %c0_32] : memref<1x1x1024xf32, #tpu.memory_space<vmem>>, vector<1x1x1024xf32>
      tpu.vector_store %arg9[%c0_30, %c0_31, %c0_32], %37 {strides = array<i32>} : memref<1x1x1024xf32, #tpu.memory_space<vmem>>, vector<1x1x1024xf32>,
    } else {
    }
    return
  }
  func.func @transform_0(%arg0: i32, %arg1: i32) -> (i32, i32, i32) {
    %c0_i32 = arith.constant 0 : i32
    %c0_i32_0 = arith.constant 0 : i32
    return %arg0, %arg1, %c0_i32 : i32, i32, i32
  }
  func.func @transform_1(%arg0: i32, %arg1: i32) -> (i32, i32) {
    %c0_i32 = arith.constant 0 : i32
    %c0_i32_0 = arith.constant 0 : i32
    %c0_i32_1 = arith.constant 0 : i32
    return %c0_i32, %c0_i32_0 : i32, i32
  }
  func.func @transform_2(%arg0: i32, %arg1: i32) -> (i32, i32) {
    %c0_i32 = arith.constant 0 : i32
    %c0_i32_0 = arith.constant 0 : i32
    %c0_i32_1 = arith.constant 0 : i32
    return %c0_i32, %c0_i32_0 : i32, i32
  }
  func.func @transform_3(%arg0: i32, %arg1: i32) -> (i32, i32) {
    %c0_i32 = arith.constant 0 : i32
    %c0_i32_0 = arith.constant 0 : i32
    %c0_i32_1 = arith.constant 0 : i32
    return %c0_i32, %c0_i32_0 : i32, i32
  }
  func.func @transform_4(%arg0: i32, %arg1: i32) -> (i32, i32) {
    %c0_i32 = arith.constant 0 : i32
    %c0_i32_0 = arith.constant 0 : i32
    %c0_i32_1 = arith.constant 0 : i32
    return %c0_i32, %c0_i32_0 : i32, i32
  }
  func.func @transform_5(%arg0: i32, %arg1: i32) -> (i32, i32) {
    %c0_i32 = arith.constant 0 : i32
    %c0_i32_0 = arith.constant 0 : i32
    %c0_i32_1 = arith.constant 0 : i32
    return %c0_i32, %c0_i32_0 : i32, i32
  }
  func.func @transform_6(%arg0: i32, %arg1: i32) -> (i32, i32) {
    %c0_i32 = arith.constant 0 : i32
    %c0_i32_0 = arith.constant 0 : i32
    %c0_i32_1 = arith.constant 0 : i32
    return %c0_i32, %c0_i32_0 : i32, i32
  }
  func.func @transform_7(%arg0: i32, %arg1: i32) -> (i32, i32, i32) {
    %c0_i32 = arith.constant 0 : i32
    %c0_i32_0 = arith.constant 0 : i32
    %c0_i32_1 = arith.constant 0 : i32
    return %arg0, %c0_i32, %c0_i32_0 : i32, i32, i32
  }
}

module attributes {stable_mosaic.version = 11 : i64} {
  func.func @kernel(%arg0: i32, %arg1: i32, %arg2: memref<1x16x3xf32, #tpu.memory_space<vmem>>, %arg3: memref<3x64xf32, #tpu.memory_space<vmem>>, %arg4: memref<1x64xf32, #tpu.memory_space<vmem>>, %arg5: memref<64x128xf32, #tpu.memory_space<vmem>>, %arg6: memref<1x128xf32, #tpu.memory_space<vmem>>, %arg7: memref<128x1024xf32, #tpu.memory_space<vmem>>, %arg8: memref<1x1024xf32, #tpu.memory_space<vmem>>, %arg9: memref<1x1x1024xf32, #tpu.memory_space<vmem>>, %arg10: memref<8x1024xf32, #tpu.memory_space<vmem>>) attributes {dimension_semantics = [#tpu.dimension_semantics<parallel>, #tpu.dimension_semantics<arbitrary>], iteration_bounds = array<i64: 2, 1>, scalar_prefetch = 0 : i64, scratch_operands = 1 : i64, tpu.core_type = #tpu.core_type<tc>, window_params = [{transform_indices = @transform_0, window_bounds = array<i64: 1, 16, 3>}, {pipeline_mode = #tpu.pipeline_mode<synchronous>, transform_indices = @transform_1, window_bounds = array<i64: 3, 64>}, {pipeline_mode = #tpu.pipeline_mode<synchronous>, transform_indices = @transform_2, window_bounds = array<i64: 1, 64>}, {pipeline_mode = #tpu.pipeline_mode<synchronous>, transform_indices = @transform_3, window_bounds = array<i64: 64, 128>}, {pipeline_mode = #tpu.pipeline_mode<synchronous>, transform_indices = @transform_4, window_bounds = array<i64: 1, 128>}, {pipeline_mode = #tpu.pipeline_mode<synchronous>, transform_indices = @transform_5, window_bounds = array<i64: 128, 1024>}, {pipeline_mode = #tpu.pipeline_mode<synchronous>, transform_indices = @transform_6, window_bounds = array<i64: 1, 1024>}, {transform_indices = @transform_7, window_bounds = array<i64: 1, 1, 1024>}]} {
    %c0_i32 = arith.constant 0 : i32
    %0 = arith.cmpi eq, %arg1, %c0_i32 : i32
    %1 = arith.extui %0 : i1 to i32
    %c0_i32_0 = arith.constant 0 : i32
    %2 = arith.cmpi ne, %1, %c0_i32_0 : i32
    scf.if %2 {
      %cst_26 = arith.constant 0xFF800000 : f32
      %32 = vector.broadcast %cst_26 : f32 to vector<8x1024xf32>
      %c0_27 = arith.constant 0 : index
      %c0_28 = arith.constant 0 : index
      %33 = vector.load %arg10[%c0_27, %c0_28] : memref<8x1024xf32, #tpu.memory_space<vmem>>, vector<8x1024xf32>
      tpu.vector_store %arg10[%c0_27, %c0_28], %32 {strides = array<i32>} : memref<8x1024xf32, #tpu.memory_space<vmem>>, vector<8x1024xf32>,
    } else {
    }
    %c0 = arith.constant 0 : index
    %c0_1 = arith.constant 0 : index
    %c0_2 = arith.constant 0 : index
    %3 = vector.load %arg2[%c0, %c0_1, %c0_2] : memref<1x16x3xf32, #tpu.memory_space<vmem>>, vector<1x16x3xf32>
    %4 = vector.shape_cast %3 : vector<1x16x3xf32> to vector<16x3xf32>
    %c0_3 = arith.constant 0 : index
    %c0_4 = arith.constant 0 : index
    %5 = vector.load %arg3[%c0_3, %c0_4] : memref<3x64xf32, #tpu.memory_space<vmem>>, vector<3x64xf32>
    %cst = arith.constant dense<0.000000e+00> : vector<16x64xf32>
    %6 = tpu.matmul %4, %5, %cst {dimension_numbers = #tpu.dot_dimension_numbers<[1], [0], [0], [1], [0, 0, 1, 1], [], []>} : vector<16x3xf32>, vector<3x64xf32>, vector<16x64xf32> -> vector<16x64xf32>
    %c0_5 = arith.constant 0 : index
    %c0_6 = arith.constant 0 : index
    %7 = vector.load %arg4[%c0_5, %c0_6] : memref<1x64xf32, #tpu.memory_space<vmem>>, vector<1x64xf32>
    %8 = vector.broadcast %7 : vector<1x64xf32> to vector<16x64xf32>
    %9 = arith.addf %6, %8 : vector<16x64xf32>
    %cst_7 = arith.constant 0.000000e+00 : f32
    %10 = vector.broadcast %cst_7 : f32 to vector<16x64xf32>
    %11 = arith.maximumf %9, %10 : vector<16x64xf32>
    %c0_8 = arith.constant 0 : index
    %c0_9 = arith.constant 0 : index
    %12 = vector.load %arg5[%c0_8, %c0_9] : memref<64x128xf32, #tpu.memory_space<vmem>>, vector<64x128xf32>
    %cst_10 = arith.constant dense<0.000000e+00> : vector<16x128xf32>
    %13 = tpu.matmul %11, %12, %cst_10 {dimension_numbers = #tpu.dot_dimension_numbers<[1], [0], [0], [1], [0, 0, 1, 1], [], []>} : vector<16x64xf32>, vector<64x128xf32>, vector<16x128xf32> -> vector<16x128xf32>
    %c0_11 = arith.constant 0 : index
    %c0_12 = arith.constant 0 : index
    %14 = vector.load %arg6[%c0_11, %c0_12] : memref<1x128xf32, #tpu.memory_space<vmem>>, vector<1x128xf32>
    %15 = vector.broadcast %14 : vector<1x128xf32> to vector<16x128xf32>
    %16 = arith.addf %13, %15 : vector<16x128xf32>
    %cst_13 = arith.constant 0.000000e+00 : f32
    %17 = vector.broadcast %cst_13 : f32 to vector<16x128xf32>
    %18 = arith.maximumf %16, %17 : vector<16x128xf32>
    %c0_14 = arith.constant 0 : index
    %c0_15 = arith.constant 0 : index
    %19 = vector.load %arg7[%c0_14, %c0_15] : memref<128x1024xf32, #tpu.memory_space<vmem>>, vector<128x1024xf32>
    %cst_16 = arith.constant dense<0.000000e+00> : vector<16x1024xf32>
    %20 = tpu.matmul %18, %19, %cst_16 {dimension_numbers = #tpu.dot_dimension_numbers<[1], [0], [0], [1], [0, 0, 1, 1], [], []>} : vector<16x128xf32>, vector<128x1024xf32>, vector<16x1024xf32> -> vector<16x1024xf32>
    %c0_17 = arith.constant 0 : index
    %c0_18 = arith.constant 0 : index
    %21 = vector.load %arg8[%c0_17, %c0_18] : memref<1x1024xf32, #tpu.memory_space<vmem>>, vector<1x1024xf32>
    %22 = vector.broadcast %21 : vector<1x1024xf32> to vector<16x1024xf32>
    %23 = arith.addf %20, %22 : vector<16x1024xf32>
    %24 = vector.shape_cast %23 : vector<16x1024xf32> to vector<2x8x1024xf32>
    %cst_19 = arith.constant dense<0xFF800000> : vector<8x1024xf32>
    %25 = vector.multi_reduction <maximumf>, %24, %cst_19 [0] : vector<2x8x1024xf32> to vector<8x1024xf32>
    %c0_20 = arith.constant 0 : index
    %c0_21 = arith.constant 0 : index
    %26 = vector.load %arg10[%c0_20, %c0_21] : memref<8x1024xf32, #tpu.memory_space<vmem>>, vector<8x1024xf32>
    %27 = arith.maximumf %26, %25 : vector<8x1024xf32>
    %c0_22 = arith.constant 0 : index
    %c0_23 = arith.constant 0 : index
    %28 = vector.load %arg10[%c0_22, %c0_23] : memref<8x1024xf32, #tpu.memory_space<vmem>>, vector<8x1024xf32>
    tpu.vector_store %arg10[%c0_22, %c0_23], %27 {strides = array<i32>} : memref<8x1024xf32, #tpu.memory_space<vmem>>, vector<8x1024xf32>,
    %c0_i32_24 = arith.constant 0 : i32
    %29 = arith.cmpi eq, %arg1, %c0_i32_24 : i32
    %30 = arith.extui %29 : i1 to i32
    %c0_i32_25 = arith.constant 0 : i32
    %31 = arith.cmpi ne, %30, %c0_i32_25 : i32
    scf.if %31 {
      %c0_26 = arith.constant 0 : index
      %c0_27 = arith.constant 0 : index
      %32 = vector.load %arg10[%c0_26, %c0_27] : memref<8x1024xf32, #tpu.memory_space<vmem>>, vector<8x1024xf32>
      %cst_28 = arith.constant dense<0xFF800000> : vector<1024xf32>
      %33 = vector.multi_reduction <maximumf>, %32, %cst_28 [0] : vector<8x1024xf32> to vector<1024xf32>
      %34 = vector.shape_cast %33 : vector<1024xf32> to vector<1x1024xf32>
      %35 = vector.shape_cast %34 : vector<1x1024xf32> to vector<1x1x1024xf32>
      %c0_29 = arith.constant 0 : index
      %c0_30 = arith.constant 0 : index
      %c0_31 = arith.constant 0 : index
      %36 = vector.load %arg9[%c0_29, %c0_30, %c0_31] : memref<1x1x1024xf32, #tpu.memory_space<vmem>>, vector<1x1x1024xf32>
      tpu.vector_store %arg9[%c0_29, %c0_30, %c0_31], %35 {strides = array<i32>} : memref<1x1x1024xf32, #tpu.memory_space<vmem>>, vector<1x1x1024xf32>,
    } else {
    }
    return
  }
  func.func @transform_0(%arg0: i32, %arg1: i32) -> (i32, i32, i32) {
    %c0_i32 = arith.constant 0 : i32
    %c0_i32_0 = arith.constant 0 : i32
    return %arg0, %arg1, %c0_i32 : i32, i32, i32
  }
  func.func @transform_1(%arg0: i32, %arg1: i32) -> (i32, i32) {
    %c0_i32 = arith.constant 0 : i32
    %c0_i32_0 = arith.constant 0 : i32
    %c0_i32_1 = arith.constant 0 : i32
    return %c0_i32, %c0_i32_0 : i32, i32
  }
  func.func @transform_2(%arg0: i32, %arg1: i32) -> (i32, i32) {
    %c0_i32 = arith.constant 0 : i32
    %c0_i32_0 = arith.constant 0 : i32
    %c0_i32_1 = arith.constant 0 : i32
    return %c0_i32, %c0_i32_0 : i32, i32
  }
  func.func @transform_3(%arg0: i32, %arg1: i32) -> (i32, i32) {
    %c0_i32 = arith.constant 0 : i32
    %c0_i32_0 = arith.constant 0 : i32
    %c0_i32_1 = arith.constant 0 : i32
    return %c0_i32, %c0_i32_0 : i32, i32
  }
  func.func @transform_4(%arg0: i32, %arg1: i32) -> (i32, i32) {
    %c0_i32 = arith.constant 0 : i32
    %c0_i32_0 = arith.constant 0 : i32
    %c0_i32_1 = arith.constant 0 : i32
    return %c0_i32, %c0_i32_0 : i32, i32
  }
  func.func @transform_5(%arg0: i32, %arg1: i32) -> (i32, i32) {
    %c0_i32 = arith.constant 0 : i32
    %c0_i32_0 = arith.constant 0 : i32
    %c0_i32_1 = arith.constant 0 : i32
    return %c0_i32, %c0_i32_0 : i32, i32
  }
  func.func @transform_6(%arg0: i32, %arg1: i32) -> (i32, i32) {
    %c0_i32 = arith.constant 0 : i32
    %c0_i32_0 = arith.constant 0 : i32
    %c0_i32_1 = arith.constant 0 : i32
    return %c0_i32, %c0_i32_0 : i32, i32
  }
  func.func @transform_7(%arg0: i32, %arg1: i32) -> (i32, i32, i32) {
    %c0_i32 = arith.constant 0 : i32
    %c0_i32_0 = arith.constant 0 : i32
    %c0_i32_1 = arith.constant 0 : i32
    return %arg0, %c0_i32, %c0_i32_0 : i32, i32, i32
  }
}

</mosaic_0001>

<llo_original>
// kernel: pointnet_cls_forward.2
$region0: #{pointnet_cls_forward.2}
  #allocation0 [shape = 'u32[]', space=smem, size = 0x4, offset = 0x4, fixed_abs, tag = 'smem constant byte address 0x4 - core index']
  #allocation1 [shape = 'u32[144,128]{1,0:T(1,128)}', space=vmem, size = 0x12000, scoped, tag = 'internal scratch']
  #allocation2 [shape = 'f32[8,1024]{1,0:T(8,128)}', space=vmem, size = 0x8000, scoped, tag = 'scratch operand']
  %s0 = inlined_call_operand.vmem [shape: f32[2,16,3], index: 0, kind: input, shape index: {}]
  %s1 = inlined_call_operand.hbm [shape: f32[3,64], index: 1, kind: input, shape index: {}]
  %s2 = inlined_call_operand.hbm [shape: f32[1,64], index: 2, kind: input, shape index: {}]
  %s3 = inlined_call_operand.hbm [shape: f32[64,128], index: 3, kind: input, shape index: {}]
  %s4 = inlined_call_operand.hbm [shape: f32[1,128], index: 4, kind: input, shape index: {}]
  %s5 = inlined_call_operand.hbm [shape: f32[128,1024], index: 5, kind: input, shape index: {}]
  %s6 = inlined_call_operand.hbm [shape: f32[1,1024], index: 6, kind: input, shape index: {}]
  %s7 = inlined_call_operand.vmem [shape: f32[2,1,1024], index: 7, kind: output, shape index: {}]
  %s8 = sld [smem:[#allocation0]]
  $region93: #{pointnet_cls_forward.2} parent=0
    _
  %s10 = ssub.s32 1, %s8
  %s11 = scalar_select 0, %s10, %s8
  $region1: #{pointnet_cls_forward.2} parent=0
    #allocation3 [shape = 'u8[2048]{0}', space=vmem, size = 0x800, scoped, tag = 'input window, operand 1, single buffered']
    #allocation4 [shape = 's32[2]{0}', space=sflag, size = 0x8, scoped, tag = 'scoped memory for pointnet_cls_forward.2']
    #allocation5 [shape = 'u8[512]{0}', space=vmem, size = 0x400, scoped, tag = 'input window, operand 2, single buffered']
    #allocation6 [shape = 's32[1]{0}', space=sflag, size = 0x4, scoped, tag = 'scoped memory for pointnet_cls_forward.2']
    #allocation7 [shape = 'u8[32768]{0}', space=vmem, size = 0x8000, scoped, tag = 'input window, operand 3, single buffered']
    #allocation8 [shape = 'u8[512]{0}', space=vmem, size = 0x400, scoped, tag = 'input window, operand 4, single buffered']
    #allocation9 [shape = 's32[1]{0}', space=sflag, size = 0x4, scoped, tag = 'scoped memory for pointnet_cls_forward.2']
    #allocation10 [shape = 'u8[524288]{0}', space=vmem, size = 0x80000, scoped, tag = 'input window, operand 5, single buffered']
    #allocation11 [shape = 'u8[4096]{0}', space=vmem, size = 0x1000, scoped, tag = 'input window, operand 6, single buffered']
    #allocation12 [shape = 's32[1]{0}', space=sflag, size = 0x4, scoped, tag = 'scoped memory for pointnet_cls_forward.2']
    %12 = vsyncpa [#allocation4], 0
    %13 = vsyncpa [#allocation6], 0
    %14 = vsyncpa [#allocation9], 0
    %15 = vsyncpa [#allocation12], 0
    loop: start=0, step=1, limit=4
    $region2: #{pointnet_cls_forward.2} parent=1 // loop_pre_header
      _
    $region3: #{pointnet_cls_forward.2} parent=1 // loop_header
      %s17 = sphi 0, %s21
      %p18 = scmp.ge.s32.totalorder %s17, 4
      %s24 = sphi 0, %s36
      %s25 = sphi 0, %s32
      %s26 = sphi 0, %s24
      %s27 = sphi 0, %s25
      %s28 = sphi 0, %s26
      %s29 = sphi 0, %s27
      %s41 = sphi 0, %s43
      %s44 = sphi 0, %s41
      %s45 = sphi 0, %s44
      %s61 = sphi 0, %s45
      %s65 = sphi 0, %s65
      %s67 = sphi 0, %s65
      %s68 = sphi 0, %s67
      %s82 = sphi 0, %s68
      %s86 = sphi 0, %s86
      %s88 = sphi 0, %s86
      %s89 = sphi 0, %s88
      %s103 = sphi 0, %s89
      %s107 = sphi 0, %s107
      %s109 = sphi 0, %s107
      %s110 = sphi 0, %s109
      %s124 = sphi 0, %s110
      %s128 = sphi 0, %s128
      %s130 = sphi 0, %s128
      %s131 = sphi 0, %s130
      %s145 = sphi 0, %s131
      %s149 = sphi 0, %s149
      %s151 = sphi 0, %s149
      %s152 = sphi 0, %s151
      %s166 = sphi 0, %s152
      %s170 = sphi 0, %s170
      %s172 = sphi 0, %s170
      %s173 = sphi 0, %s172
      %s187 = sphi 0, %s173
      %s193 = sphi 0, %s195
      %s196 = sphi 0, %s193
      %s197 = sphi 0, %s196
      %s213 = sphi 0, %s197
    $region4: #{pointnet_cls_forward.2} parent=1 // loop_header_branch
      %20 = sbr.rel (%p18) target = $region8
    $region5: #{pointnet_cls_forward.2} parent=1 // loop_body
      %s22 = ssub.s32 %s17, 1
      %s23 = ssub.s32 %s17, 2
      %s30 = sadd.s32 1, %s25
      %p31 = scmp.ge.s32.totalorder %s30, 1
      %s32 = scalar_select %p31, 0, %s30
      %s33 = sadd.s32 1, %s24
      %s34 = scalar_select %p31, %s33, %s24
      %p35 = scmp.ge.s32.totalorder %s34, 2
      %s36 = scalar_select %p35, 0, %s34
      %s37 = ssub.s32 %s24, %s36
      %s38 = ssub.s32 %s25, %s32
      %s39 = sor.u32 %s37, %s38
      %p40 = scmp.eq.s32.totalorder %s39, 0
      %s42 = sadd.s32 %s41, 1
      %s43 = scalar_select %p40, %s41, %s42
      %p46 = pneg %p40
      %p47 = scmp.eq.s32.totalorder %s17, 1
      %p48 = por %p46, %p47
      %p49 = scmp.ne.s32.totalorder %s41, %s44
      %p50 = scmp.eq.s32.totalorder %s17, 0
      %p51 = por %p49, %p50
      %p52 = scmp.ne.s32.totalorder %s41, %s44
      %p53 = scmp.eq.s32.totalorder %s22, 1
      %p54 = por %p52, %p53
      %p55 = scmp.ne.s32.totalorder %s44, %s45
      %p56 = scmp.eq.s32.totalorder %s22, 0
      %p57 = por %p55, %p56
      %p58 = scmp.ne.s32.totalorder %s44, %s45
      %p59 = scmp.eq.s32.totalorder %s23, 1
      %p60 = por %p58, %p59
      %p62 = scmp.ne.s32.totalorder %s45, %s61
      %p63 = scmp.eq.s32.totalorder %s23, 0
      %p64 = por %p62, %p63
      %s66 = sadd.s32 %s65, 1
      %p69 = scmp.eq.s32.totalorder %s17, 1
      %p70 = scmp.ne.s32.totalorder %s65, %s67
      %p71 = scmp.eq.s32.totalorder %s17, 0
      %p72 = por %p70, %p71
      %p73 = scmp.ne.s32.totalorder %s65, %s67
      %p74 = scmp.eq.s32.totalorder %s22, 1
      %p75 = por %p73, %p74
      %p76 = scmp.ne.s32.totalorder %s67, %s68
      %p77 = scmp.eq.s32.totalorder %s22, 0
      %p78 = por %p76, %p77
      %p79 = scmp.ne.s32.totalorder %s67, %s68
      %p80 = scmp.eq.s32.totalorder %s23, 1
      %p81 = por %p79, %p80
      %p83 = scmp.ne.s32.totalorder %s68, %s82
      %p84 = scmp.eq.s32.totalorder %s23, 0
      %p85 = por %p83, %p84
      %s87 = sadd.s32 %s86, 1
      %p90 = scmp.eq.s32.totalorder %s17, 1
      %p91 = scmp.ne.s32.totalorder %s86, %s88
      %p92 = scmp.eq.s32.totalorder %s17, 0
      %p93 = por %p91, %p92
      %p94 = scmp.ne.s32.totalorder %s86, %s88
      %p95 = scmp.eq.s32.totalorder %s22, 1
      %p96 = por %p94, %p95
      %p97 = scmp.ne.s32.totalorder %s88, %s89
      %p98 = scmp.eq.s32.totalorder %s22, 0
      %p99 = por %p97, %p98
      %p100 = scmp.ne.s32.totalorder %s88, %s89
      %p101 = scmp.eq.s32.totalorder %s23, 1
      %p102 = por %p100, %p101
      %p104 = scmp.ne.s32.totalorder %s89, %s103
      %p105 = scmp.eq.s32.totalorder %s23, 0
      %p106 = por %p104, %p105
      %s108 = sadd.s32 %s107, 1
      %p111 = scmp.eq.s32.totalorder %s17, 1
      %p112 = scmp.ne.s32.totalorder %s107, %s109
      %p113 = scmp.eq.s32.totalorder %s17, 0
      %p114 = por %p112, %p113
      %p115 = scmp.ne.s32.totalorder %s107, %s109
      %p116 = scmp.eq.s32.totalorder %s22, 1
      %p117 = por %p115, %p116
      %p118 = scmp.ne.s32.totalorder %s109, %s110
      %p119 = scmp.eq.s32.totalorder %s22, 0
      %p120 = por %p118, %p119
      %p121 = scmp.ne.s32.totalorder %s109, %s110
      %p122 = scmp.eq.s32.totalorder %s23, 1
      %p123 = por %p121, %p122
      %p125 = scmp.ne.s32.totalorder %s110, %s124
      %p126 = scmp.eq.s32.totalorder %s23, 0
      %p127 = por %p125, %p126
      %s129 = sadd.s32 %s128, 1
      %p132 = scmp.eq.s32.totalorder %s17, 1
      %p133 = scmp.ne.s32.totalorder %s128, %s130
      %p134 = scmp.eq.s32.totalorder %s17, 0
      %p135 = por %p133, %p134
      %p136 = scmp.ne.s32.totalorder %s128, %s130
      %p137 = scmp.eq.s32.totalorder %s22, 1
      %p138 = por %p136, %p137
      %p139 = scmp.ne.s32.totalorder %s130, %s131
      %p140 = scmp.eq.s32.totalorder %s22, 0
      %p141 = por %p139, %p140
      %p142 = scmp.ne.s32.totalorder %s130, %s131
      %p143 = scmp.eq.s32.totalorder %s23, 1
      %p144 = por %p142, %p143
      %p146 = scmp.ne.s32.totalorder %s131, %s145
      %p147 = scmp.eq.s32.totalorder %s23, 0
      %p148 = por %p146, %p147
      %s150 = sadd.s32 %s149, 1
      %p153 = scmp.eq.s32.totalorder %s17, 1
      %p154 = scmp.ne.s32.totalorder %s149, %s151
      %p155 = scmp.eq.s32.totalorder %s17, 0
      %p156 = por %p154, %p155
      %p157 = scmp.ne.s32.totalorder %s149, %s151
      %p158 = scmp.eq.s32.totalorder %s22, 1
      %p159 = por %p157, %p158
      %p160 = scmp.ne.s32.totalorder %s151, %s152
      %p161 = scmp.eq.s32.totalorder %s22, 0
      %p162 = por %p160, %p161
      %p163 = scmp.ne.s32.totalorder %s151, %s152
      %p164 = scmp.eq.s32.totalorder %s23, 1
      %p165 = por %p163, %p164
      %p167 = scmp.ne.s32.totalorder %s152, %s166
      %p168 = scmp.eq.s32.totalorder %s23, 0
      %p169 = por %p167, %p168
      %s171 = sadd.s32 %s170, 1
      %p174 = scmp.eq.s32.totalorder %s17, 1
      %p175 = scmp.ne.s32.totalorder %s170, %s172
      %p176 = scmp.eq.s32.totalorder %s17, 0
      %p177 = por %p175, %p176
      %p178 = scmp.ne.s32.totalorder %s170, %s172
      %p179 = scmp.eq.s32.totalorder %s22, 1
      %p180 = por %p178, %p179
      %p181 = scmp.ne.s32.totalorder %s172, %s173
      %p182 = scmp.eq.s32.totalorder %s22, 0
      %p183 = por %p181, %p182
      %p184 = scmp.ne.s32.totalorder %s172, %s173
      %p185 = scmp.eq.s32.totalorder %s23, 1
      %p186 = por %p184, %p185
      %p188 = scmp.ne.s32.totalorder %s173, %s187
      %p189 = scmp.eq.s32.totalorder %s23, 0
      %p190 = por %p188, %p189
      %s191 = ssub.s32 %s24, %s36
      %p192 = scmp.eq.s32.totalorder %s191, 0
      %s194 = sadd.s32 %s193, 1
      %s195 = scalar_select %p192, %s193, %s194
      %p198 = pneg %p192
      %p199 = scmp.eq.s32.totalorder %s17, 1
      %p200 = por %p198, %p199
      %p201 = scmp.ne.s32.totalorder %s193, %s196
      %p202 = scmp.eq.s32.totalorder %s17, 0
      %p203 = por %p201, %p202
      %p204 = scmp.ne.s32.totalorder %s193, %s196
      %p205 = scmp.eq.s32.totalorder %s22, 1
      %p206 = por %p204, %p205
      %p207 = scmp.ne.s32.totalorder %s196, %s197
      %p208 = scmp.eq.s32.totalorder %s22, 0
      %p209 = por %p207, %p208
      %p210 = scmp.ne.s32.totalorder %s196, %s197
      %p211 = scmp.eq.s32.totalorder %s23, 1
      %p212 = por %p210, %p211
      %p214 = scmp.ne.s32.totalorder %s197, %s213
      %p215 = scmp.eq.s32.totalorder %s23, 0
      %p216 = por %p214, %p215
      %p217 = scmp.le.s32.totalorder 1, %s17
      %p218 = scmp.lt.s32.totalorder %s17, 3
      %p219 = pnand %p217, %p218
      %p220 = pneg %p219
      // Predicated region
      $region9: #{pointnet_cls_forward.2} parent=5 // pred_check
        _
      $region10: #{pointnet_cls_forward.2} parent=5 // pred_check_branch
        %222 = sbr.rel (%p219) target = $region12
      $region11: #{pointnet_cls_forward.2} parent=5 // pred_region
        %s223 = ssub.s32 %s17, 1
        // Predicated region
        $region13: #{pointnet_cls_forward.2} parent=11 // pred_check
          %p224 = pneg %p78
        $region14: #{pointnet_cls_forward.2} parent=11 // pred_check_branch
          %226 = sbr.rel (%p224) target = $region16
        $region15: #{pointnet_cls_forward.2} parent=11 // pred_region
          %s228 = ssub.s32 64, 64
          %229 = vsyncadd [#allocation4], %s228
          %s231 = sshll.u32 [#allocation3], 4
          %s232 = int_to_ptr.vmem [resolvable:$true] %s231
          %234 = dma.hbm_to_vmem [thread:$0]  %s1, 64, %s232, [#allocation4]
        $region16: #{pointnet_cls_forward.2} parent=11 // pred_fallthru
          _
        // Predicated region
        $region17: #{pointnet_cls_forward.2} parent=11 // pred_check
          %p235 = pneg %p99
        $region18: #{pointnet_cls_forward.2} parent=11 // pred_check_branch
          %237 = sbr.rel (%p235) target = $region20
        $region19: #{pointnet_cls_forward.2} parent=11 // pred_region
          %s239 = ssub.s32 16, 16
          %240 = vsyncadd [#allocation6], %s239
          %s242 = sshll.u32 [#allocation5], 4
          %s243 = int_to_ptr.vmem [resolvable:$true] %s242
          %245 = dma.hbm_to_vmem [thread:$0]  %s2, 16, %s243, [#allocation6]
        $region20: #{pointnet_cls_forward.2} parent=11 // pred_fallthru
          _
        // Predicated region
        $region21: #{pointnet_cls_forward.2} parent=11 // pred_check
          %p246 = pneg %p120
        $region22: #{pointnet_cls_forward.2} parent=11 // pred_check_branch
          %248 = sbr.rel (%p246) target = $region24
        $region23: #{pointnet_cls_forward.2} parent=11 // pred_region
          %s250 = ssub.s32 1024, 1024
          %251 = vsyncadd [#allocation6], %s250
          %s252 = sshll.u32 [#allocation7], 4
          %s253 = int_to_ptr.vmem [resolvable:$true] %s252
          %258 = dma.hbm_to_vmem [thread:$0]  %s3, 1024, %s253, [#allocation6], 128, 128, 8
        $region24: #{pointnet_cls_forward.2} parent=11 // pred_fallthru
          _
        // Predicated region
        $region25: #{pointnet_cls_forward.2} parent=11 // pred_check
          %p259 = pneg %p141
        $region26: #{pointnet_cls_forward.2} parent=11 // pred_check_branch
          %261 = sbr.rel (%p259) target = $region28
        $region27: #{pointnet_cls_forward.2} parent=11 // pred_region
          %s263 = ssub.s32 16, 16
          %264 = vsyncadd [#allocation9], %s263
          %s266 = sshll.u32 [#allocation8], 4
          %s267 = int_to_ptr.vmem [resolvable:$true] %s266
          %269 = dma.hbm_to_vmem [thread:$0]  %s4, 16, %s267, [#allocation9]
        $region28: #{pointnet_cls_forward.2} parent=11 // pred_fallthru
          _
        // Predicated region
        $region29: #{pointnet_cls_forward.2} parent=11 // pred_check
          %p270 = pneg %p162
        $region30: #{pointnet_cls_forward.2} parent=11 // pred_check_branch
          %272 = sbr.rel (%p270) target = $region32
        $region31: #{pointnet_cls_forward.2} parent=11 // pred_region
          %s274 = ssub.s32 16384, 16384
          %275 = vsyncadd [#allocation9], %s274
          %s276 = sshll.u32 [#allocation10], 4
          %s277 = int_to_ptr.vmem [resolvable:$true] %s276
          %282 = dma.hbm_to_vmem [thread:$0]  %s5, 16384, %s277, [#allocation9], 1024, 1024, 64
        $region32: #{pointnet_cls_forward.2} parent=11 // pred_fallthru
          _
        // Predicated region
        $region33: #{pointnet_cls_forward.2} parent=11 // pred_check
          %p283 = pneg %p183
        $region34: #{pointnet_cls_forward.2} parent=11 // pred_check_branch
          %285 = sbr.rel (%p283) target = $region36
        $region35: #{pointnet_cls_forward.2} parent=11 // pred_region
          %s287 = ssub.s32 128, 128
          %288 = vsyncadd [#allocation12], %s287
          %s290 = sshll.u32 [#allocation11], 4
          %s291 = int_to_ptr.vmem [resolvable:$true] %s290
          %293 = dma.hbm_to_vmem [thread:$0]  %s6, 128, %s291, [#allocation12]
        $region36: #{pointnet_cls_forward.2} parent=11 // pred_fallthru
          _
      $region12: #{pointnet_cls_forward.2} parent=5 // pred_fallthru
        _
      %p294 = scmp.lt.s32.totalorder %s17, 2
      // Predicated region
      $region37: #{pointnet_cls_forward.2} parent=5 // pred_check
        %p295 = pneg %p294
      $region38: #{pointnet_cls_forward.2} parent=5 // pred_check_branch
        %297 = sbr.rel (%p295) target = $region40
      $region39: #{pointnet_cls_forward.2} parent=5 // pred_region
        // Predicated region
        $region41: #{pointnet_cls_forward.2} parent=39 // pred_check
          %p298 = pneg %p51
        $region42: #{pointnet_cls_forward.2} parent=39 // pred_check_branch
          %300 = sbr.rel (%p298) target = $region44
        $region43: #{pointnet_cls_forward.2} parent=39 // pred_region
          %s301 = smul.u32 2, %s25
          %p302 = scmp.lt.s32.totalorder %s24, 1
          %s303 = scalar_select %p302, %s24, 1
          %p304 = scmp.lt.s32.totalorder %s301, 1
          %s305 = scalar_select %p304, %s301, 1
          %s306 = smul.addr %s303, 2
          %s307 = sadd.s32 %s305, %s306
          %s308 = smul.addr %s307, 8
          %s309 = scalar_lea.vmem %s0, %s308
          %s310 = smul.u32 2, %s25
        $region44: #{pointnet_cls_forward.2} parent=39 // pred_fallthru
          _
      $region40: #{pointnet_cls_forward.2} parent=5 // pred_fallthru
        _
      %p311 = scmp.le.s32.totalorder 1, %s17
      %p312 = scmp.lt.s32.totalorder %s17, 3
      %p313 = pnand %p311, %p312
      %p314 = pneg %p313
      // Predicated region
      $region45: #{pointnet_cls_forward.2} parent=5 // pred_check
        _
      $region46: #{pointnet_cls_forward.2} parent=5 // pred_check_branch
        %316 = sbr.rel (%p313) target = $region48
      $region47: #{pointnet_cls_forward.2} parent=5 // pred_region
        %s317 = ssub.s32 %s17, 1
        // Predicated region
        $region49: #{pointnet_cls_forward.2} parent=47 // pred_check
          %p318 = pneg %p78
        $region50: #{pointnet_cls_forward.2} parent=47 // pred_check_branch
          %320 = sbr.rel (%p318) target = $region52
        $region51: #{pointnet_cls_forward.2} parent=47 // pred_region
          %321 = dma.done [#allocation4], 64
        $region52: #{pointnet_cls_forward.2} parent=47 // pred_fallthru
          _
        // Predicated region
        $region53: #{pointnet_cls_forward.2} parent=47 // pred_check
          %p322 = pneg %p99
        $region54: #{pointnet_cls_forward.2} parent=47 // pred_check_branch
          %324 = sbr.rel (%p322) target = $region56
        $region55: #{pointnet_cls_forward.2} parent=47 // pred_region
          %325 = dma.done [#allocation6], 16
        $region56: #{pointnet_cls_forward.2} parent=47 // pred_fallthru
          _
        // Predicated region
        $region57: #{pointnet_cls_forward.2} parent=47 // pred_check
          %p326 = pneg %p120
        $region58: #{pointnet_cls_forward.2} parent=47 // pred_check_branch
          %328 = sbr.rel (%p326) target = $region60
        $region59: #{pointnet_cls_forward.2} parent=47 // pred_region
          %329 = dma.done [#allocation6], 1024
        $region60: #{pointnet_cls_forward.2} parent=47 // pred_fallthru
          _
        // Predicated region
        $region61: #{pointnet_cls_forward.2} parent=47 // pred_check
          %p330 = pneg %p141
        $region62: #{pointnet_cls_forward.2} parent=47 // pred_check_branch
          %332 = sbr.rel (%p330) target = $region64
        $region63: #{pointnet_cls_forward.2} parent=47 // pred_region
          %333 = dma.done [#allocation9], 16
        $region64: #{pointnet_cls_forward.2} parent=47 // pred_fallthru
          _
        // Predicated region
        $region65: #{pointnet_cls_forward.2} parent=47 // pred_check
          %p334 = pneg %p162
        $region66: #{pointnet_cls_forward.2} parent=47 // pred_check_branch
          %336 = sbr.rel (%p334) target = $region68
        $region67: #{pointnet_cls_forward.2} parent=47 // pred_region
          %337 = dma.done [#allocation9], 16384
        $region68: #{pointnet_cls_forward.2} parent=47 // pred_fallthru
          _
        // Predicated region
        $region69: #{pointnet_cls_forward.2} parent=47 // pred_check
          %p338 = pneg %p183
        $region70: #{pointnet_cls_forward.2} parent=47 // pred_check_branch
          %340 = sbr.rel (%p338) target = $region72
        $region71: #{pointnet_cls_forward.2} parent=47 // pred_region
          %341 = dma.done [#allocation12], 128
        $region72: #{pointnet_cls_forward.2} parent=47 // pred_fallthru
          _
        %s342 = smul.u32 2, %s27
        %p343 = scmp.lt.s32.totalorder %s26, 1
        %s344 = scalar_select %p343, %s26, 1
        %p345 = scmp.lt.s32.totalorder %s342, 1
        %s346 = scalar_select %p345, %s342, 1
        %s347 = smul.addr %s344, 2
        %s348 = sadd.s32 %s346, %s347
        %s349 = smul.addr %s348, 8
        %s350 = scalar_lea.vmem %s0, %s349
        %p351 = pneg %p57
        %p352 = pneg %p54
        %p353 = pneg %p78
        %p354 = pneg %p75
        %p355 = pneg %p99
        %p356 = pneg %p96
        %p357 = pneg %p120
        %p358 = pneg %p117
        %p359 = pneg %p141
        %p360 = pneg %p138
        %p361 = pneg %p162
        %p362 = pneg %p159
        %p363 = pneg %p183
        %p364 = pneg %p180
        %p365 = pneg %p209
        %p366 = pneg %p206
        %p367 = scmp.lt.s32.totalorder %s26, 1
        %s368 = scalar_select %p367, %s26, 1
        %s369 = smul.addr %s368, 8
        %s370 = scalar_lea.vmem %s7, %s369
        %s371 = smul.u32 2, %s27
        %p372 = scmp.lt.s32.totalorder %s26, 1
        %s373 = scalar_select %p372, %s26, 1
        %p374 = scmp.lt.s32.totalorder %s371, 1
        %s375 = scalar_select %p374, %s371, 1
        %s376 = smul.addr %s373, 2
        %s377 = sadd.s32 %s375, %s376
        %s378 = smul.addr %s377, 8
        %s379 = scalar_lea.vmem %s0, %s378
        %s380 = smul.u32 2, %s27
        %p381 = scmp.lt.s32.totalorder %s26, 1
        %s382 = scalar_select %p381, %s26, 1
        %s383 = smul.addr %s382, 8
        %s384 = scalar_lea.vmem %s7, %s383
        %p385 = scmp.eq.s32.totalorder %s27, 0
        // Predicated region
        $region73: #{pointnet_cls_forward.2} parent=47 // pred_check
          %p386 = pneg %p385
        $region74: #{pointnet_cls_forward.2} parent=47 // pred_check_branch
          %388 = sbr.rel (%p386) target = $region76
        $region75: #{pointnet_cls_forward.2} parent=47 // pred_region
          %389 = vst [vmem:[#allocation2] sm:$0xff] -inf
          %390 = vst [vmem:[#allocation2 + $0x8] sm:$0xff] -inf
          %391 = vst [vmem:[#allocation2 + $0x10] sm:$0xff] -inf
          %392 = vst [vmem:[#allocation2 + $0x18] sm:$0xff] -inf
          %393 = vst [vmem:[#allocation2 + $0x20] sm:$0xff] -inf
          %394 = vst [vmem:[#allocation2 + $0x28] sm:$0xff] -inf
          %395 = vst [vmem:[#allocation2 + $0x30] sm:$0xff] -inf
          %396 = vst [vmem:[#allocation2 + $0x38] sm:$0xff] -inf
        $region76: #{pointnet_cls_forward.2} parent=47 // pred_fallthru
          _
        %v397 = vld [vmem:[%s379] sm:$0xff]
        %v398 = vld [vmem:[%s379 + $0x8] sm:$0xff]
        %v399 = vld [vmem:[#allocation3] sm:$0x7]
        %v400 = vld [vmem:[#allocation5] sm:$0x1]
        %v402 = vlaneseq
        %v403 = vshrl.u32 %v402, 7
        %v404 = vsub.s32 0, %v403
        %v405 = vrot.slane %v400, %v404
        %vm407 = vcmask 23552
        %v409 = vsel %vm407, %v397, 0
        %v412 = vsel %vm407, %v398, 0
        %vm414 = vcmask 1042432
        %v416 = vsel %vm414, %v399, 0
        %418 = vmatprep.subr.mxu0 0.0
        %419 = vmatpush1.msra.mxu0 %v416
        %420 = vmatprep.subr.mxu0 0.0
        %421 = vmatpush1.msra.mxu0 0.0
        %422 = vmatprep.subr.mxu0 0.0
        %423 = vmatpush1.msra.mxu0 0.0
        %424 = vmatprep.subr.mxu0 0.0
        %425 = vmatpush1.msra.mxu0 0.0
        %426 = vmatprep.subr.mxu0 0.0
        %427 = vmatpush1.msra.mxu0 0.0
        %428 = vmatprep.subr.mxu0 0.0
        %429 = vmatpush1.msra.mxu0 0.0
        %430 = vmatprep.subr.mxu0 0.0
        %431 = vmatpush1.msra.mxu0 0.0
        %432 = vmatprep.subr.mxu0 0.0
        %433 = vmatpush1.msra.mxu0 0.0
        %434 = vmatprep.subr.mxu0 0.0
        %435 = vmatpush1.msra.mxu0 0.0
        %436 = vmatprep.subr.mxu0 0.0
        %437 = vmatpush1.msra.mxu0 0.0
        %438 = vmatprep.subr.mxu0 0.0
        %439 = vmatpush1.msra.mxu0 0.0
        %440 = vmatprep.subr.mxu0 0.0
        %441 = vmatpush1.msra.mxu0 0.0
        %442 = vmatprep.subr.mxu0 0.0
        %443 = vmatpush1.msra.mxu0 0.0
        %444 = vmatprep.subr.mxu0 0.0
        %445 = vmatpush1.msra.mxu0 0.0
        %446 = vmatprep.subr.mxu0 0.0
        %447 = vmatpush1.msra.mxu0 0.0
        %448 = vmatprep.subr.mxu0 0.0
        %449 = vmatpush1.msra.mxu0 0.0
        %450 = vmatprep.subr.mxu0 0.0
        %451 = vmatpush1.msra.mxu0 0.0
        %452 = vmatprep.subr.mxu0 0.0
        %453 = vmatpush1.msra.mxu0 0.0
        %454 = vmatprep.subr.mxu0 0.0
        %455 = vmatpush1.msra.mxu0 0.0
        %456 = vmatprep.subr.mxu0 0.0
        %457 = vmatpush1.msra.mxu0 0.0
        %458 = vmatprep.subr.mxu0 0.0
        %459 = vmatpush1.msra.mxu0 0.0
        %460 = vmatprep.subr.mxu0 0.0
        %461 = vmatpush1.msra.mxu0 0.0
        %462 = vmatprep.subr.mxu0 0.0
        %463 = vmatpush1.msra.mxu0 0.0
        %464 = vmatprep.subr.mxu0 0.0
        %465 = vmatpush1.msra.mxu0 0.0
        %466 = vmatprep.subr.mxu0 0.0
        %467 = vmatpush1.msra.mxu0 0.0
        %468 = vmatprep.subr.mxu0 0.0
        %469 = vmatpush1.msra.mxu0 0.0
        %470 = vmatprep.subr.mxu0 0.0
        %471 = vmatpush1.msra.mxu0 0.0
        %472 = vmatprep.subr.mxu0 0.0
        %473 = vmatpush1.msra.mxu0 0.0
        %474 = vmatprep.subr.mxu0 0.0
        %475 = vmatpush1.msra.mxu0 0.0
        %476 = vmatprep.subr.mxu0 0.0
        %477 = vmatpush1.msra.mxu0 0.0
        %478 = vmatprep.subr.mxu0 0.0
        %479 = vmatpush1.msra.mxu0 0.0
        %480 = vmatprep.subr.mxu0 0.0
        %481 = vmatpush1.msra.mxu0 0.0
        %482 = vmatprep.mubr.f32.mxu0 0.0
        %483 = vmatmul.mubr.f32.gmra.mrb[0].mxu0 %v409
        %v484 = vpop.f32.mrb[0].mxu0
        %v485 = vadd.f32 %v405, %v484
        %v486 = vpop.f32.mrb[0].mxu0
        %487 = vmatprep.mubr.f32.mxu0 0.0
        %488 = vmatmul.mubr.f32.gmra.mrb[0].mxu0 %v412
        %v489 = vpop.f32.mrb[0].mxu0
        %v490 = vadd.f32 %v405, %v489
        %v491 = vpop.f32.mrb[0].mxu0
        %492 = vdwg.mxu0
        %v493 = vmax.f32 %v485, 0.0
        %v494 = vmax.f32 %v490, 0.0
        %v495 = vld [vmem:[#allocation7] sm:$0xff]
        %v496 = vld [vmem:[#allocation7 + $0x8] sm:$0xff]
        %v497 = vld [vmem:[#allocation7 + $0x10] sm:$0xff]
        %v498 = vld [vmem:[#allocation7 + $0x18] sm:$0xff]
        %v499 = vld [vmem:[#allocation7 + $0x20] sm:$0xff]
        %v500 = vld [vmem:[#allocation7 + $0x28] sm:$0xff]
        %v501 = vld [vmem:[#allocation7 + $0x30] sm:$0xff]
        %v502 = vld [vmem:[#allocation7 + $0x38] sm:$0xff]
        %v503 = vld [vmem:[#allocation8] sm:$0x1]
        %v505 = vlaneseq
        %v506 = vshrl.u32 %v505, 7
        %v507 = vsub.s32 0, %v506
        %v508 = vrot.slane %v503, %v507
        %vm510 = vcmask 523264
        %v512 = vsel %vm510, %v493, 0
        %v515 = vsel %vm510, %v494, 0
        %517 = vmatprep.subr.mxu0 0.0
        %518 = vmatpush1.msra.mxu0 %v495
        %519 = vmatprep.subr.mxu0 0.0
        %520 = vmatpush1.msra.mxu0 %v496
        %521 = vmatprep.subr.mxu0 0.0
        %522 = vmatpush1.msra.mxu0 %v497
        %523 = vmatprep.subr.mxu0 0.0
        %524 = vmatpush1.msra.mxu0 %v498
        %525 = vmatprep.subr.mxu0 0.0
        %526 = vmatpush1.msra.mxu0 %v499
        %527 = vmatprep.subr.mxu0 0.0
        %528 = vmatpush1.msra.mxu0 %v500
        %529 = vmatprep.subr.mxu0 0.0
        %530 = vmatpush1.msra.mxu0 %v501
        %531 = vmatprep.subr.mxu0 0.0
        %532 = vmatpush1.msra.mxu0 %v502
        %533 = vmatprep.subr.mxu0 0.0
        %534 = vmatpush1.msra.mxu0 0.0
        %535 = vmatprep.subr.mxu0 0.0
        %536 = vmatpush1.msra.mxu0 0.0
        %537 = vmatprep.subr.mxu0 0.0
        %538 = vmatpush1.msra.mxu0 0.0
        %539 = vmatprep.subr.mxu0 0.0
        %540 = vmatpush1.msra.mxu0 0.0
        %541 = vmatprep.subr.mxu0 0.0
        %542 = vmatpush1.msra.mxu0 0.0
        %543 = vmatprep.subr.mxu0 0.0
        %544 = vmatpush1.msra.mxu0 0.0
        %545 = vmatprep.subr.mxu0 0.0
        %546 = vmatpush1.msra.mxu0 0.0
        %547 = vmatprep.subr.mxu0 0.0
        %548 = vmatpush1.msra.mxu0 0.0
        %549 = vmatprep.subr.mxu0 0.0
        %550 = vmatpush1.msra.mxu0 0.0
        %551 = vmatprep.subr.mxu0 0.0
        %552 = vmatpush1.msra.mxu0 0.0
        %553 = vmatprep.subr.mxu0 0.0
        %554 = vmatpush1.msra.mxu0 0.0
        %555 = vmatprep.subr.mxu0 0.0
        %556 = vmatpush1.msra.mxu0 0.0
        %557 = vmatprep.subr.mxu0 0.0
        %558 = vmatpush1.msra.mxu0 0.0
        %559 = vmatprep.subr.mxu0 0.0
        %560 = vmatpush1.msra.mxu0 0.0
        %561 = vmatprep.subr.mxu0 0.0
        %562 = vmatpush1.msra.mxu0 0.0
        %563 = vmatprep.subr.mxu0 0.0
        %564 = vmatpush1.msra.mxu0 0.0
        %565 = vmatprep.subr.mxu0 0.0
        %566 = vmatpush1.msra.mxu0 0.0
        %567 = vmatprep.subr.mxu0 0.0
        %568 = vmatpush1.msra.mxu0 0.0
        %569 = vmatprep.subr.mxu0 0.0
        %570 = vmatpush1.msra.mxu0 0.0
        %571 = vmatprep.subr.mxu0 0.0
        %572 = vmatpush1.msra.mxu0 0.0
        %573 = vmatprep.subr.mxu0 0.0
        %574 = vmatpush1.msra.mxu0 0.0
        %575 = vmatprep.subr.mxu0 0.0
        %576 = vmatpush1.msra.mxu0 0.0
        %577 = vmatprep.subr.mxu0 0.0
        %578 = vmatpush1.msra.mxu0 0.0
        %579 = vmatprep.subr.mxu0 0.0
        %580 = vmatpush1.msra.mxu0 0.0
        %581 = vmatprep.mubr.f32.mxu0 0.0
        %582 = vmatmul.mubr.f32.gmra.mrb[0].mxu0 %v512
        %v583 = vpop.f32.mrb[0].mxu0
        %v584 = vadd.f32 %v508, %v583
        %v585 = vpop.f32.mrb[0].mxu0
        %586 = vmatprep.mubr.f32.mxu0 0.0
        %587 = vmatmul.mubr.f32.gmra.mrb[0].mxu0 %v515
        %v588 = vpop.f32.mrb[0].mxu0
        %v589 = vadd.f32 %v508, %v588
        %v590 = vpop.f32.mrb[0].mxu0
        %591 = vdwg.mxu0
        %v592 = vmax.f32 %v584, 0.0
        %v593 = vmax.f32 %v589, 0.0
        %v594 = vld [vmem:[#allocation10] sm:$0xff]
        %v595 = vld [vmem:[#allocation10 + $0x8] sm:$0xff]
        %v596 = vld [vmem:[#allocation10 + $0x10] sm:$0xff]
        %v597 = vld [vmem:[#allocation10 + $0x18] sm:$0xff]
        %v598 = vld [vmem:[#allocation10 + $0x20] sm:$0xff]
        %v599 = vld [vmem:[#allocation10 + $0x28] sm:$0xff]
        %v600 = vld [vmem:[#allocation10 + $0x30] sm:$0xff]
        %v601 = vld [vmem:[#allocation10 + $0x38] sm:$0xff]
        %v602 = vld [vmem:[#allocation10 + $0x40] sm:$0xff]
        %v603 = vld [vmem:[#allocation10 + $0x48] sm:$0xff]
        %v604 = vld [vmem:[#allocation10 + $0x50] sm:$0xff]
        %v605 = vld [vmem:[#allocation10 + $0x58] sm:$0xff]
        %v606 = vld [vmem:[#allocation10 + $0x60] sm:$0xff]
        %v607 = vld [vmem:[#allocation10 + $0x68] sm:$0xff]
        %v608 = vld [vmem:[#allocation10 + $0x70] sm:$0xff]
        %v609 = vld [vmem:[#allocation10 + $0x78] sm:$0xff]
        %v610 = vld [vmem:[#allocation10 + $0x80] sm:$0xff]
        %v611 = vld [vmem:[#allocation10 + $0x88] sm:$0xff]
        %v612 = vld [vmem:[#allocation10 + $0x90] sm:$0xff]
        %v613 = vld [vmem:[#allocation10 + $0x98] sm:$0xff]
        %v614 = vld [vmem:[#allocation10 + $0xa0] sm:$0xff]
        %v615 = vld [vmem:[#allocation10 + $0xa8] sm:$0xff]
        %v616 = vld [vmem:[#allocation10 + $0xb0] sm:$0xff]
        %v617 = vld [vmem:[#allocation10 + $0xb8] sm:$0xff]
        %v618 = vld [vmem:[#allocation10 + $0xc0] sm:$0xff]
        %v619 = vld [vmem:[#allocation10 + $0xc8] sm:$0xff]
        %v620 = vld [vmem:[#allocation10 + $0xd0] sm:$0xff]
        %v621 = vld [vmem:[#allocation10 + $0xd8] sm:$0xff]
        %v622 = vld [vmem:[#allocation10 + $0xe0] sm:$0xff]
        %v623 = vld [vmem:[#allocation10 + $0xe8] sm:$0xff]
        %v624 = vld [vmem:[#allocation10 + $0xf0] sm:$0xff]
        %v625 = vld [vmem:[#allocation10 + $0xf8] sm:$0xff]
        %v626 = vld [vmem:[#allocation10 + $0x100] sm:$0xff]
        %v627 = vld [vmem:[#allocation10 + $0x108] sm:$0xff]
        %v628 = vld [vmem:[#allocation10 + $0x110] sm:$0xff]
        %v629 = vld [vmem:[#allocation10 + $0x118] sm:$0xff]
        %v630 = vld [vmem:[#allocation10 + $0x120] sm:$0xff]
        %v631 = vld [vmem:[#allocation10 + $0x128] sm:$0xff]
        %v632 = vld [vmem:[#allocation10 + $0x130] sm:$0xff]
        %v633 = vld [vmem:[#allocation10 + $0x138] sm:$0xff]
        %v634 = vld [vmem:[#allocation10 + $0x140] sm:$0xff]
        %v635 = vld [vmem:[#allocation10 + $0x148] sm:$0xff]
        %v636 = vld [vmem:[#allocation10 + $0x150] sm:$0xff]
        %v637 = vld [vmem:[#allocation10 + $0x158] sm:$0xff]
        %v638 = vld [vmem:[#allocation10 + $0x160] sm:$0xff]
        %v639 = vld [vmem:[#allocation10 + $0x168] sm:$0xff]
        %v640 = vld [vmem:[#allocation10 + $0x170] sm:$0xff]
        %v641 = vld [vmem:[#allocation10 + $0x178] sm:$0xff]
        %v642 = vld [vmem:[#allocation10 + $0x180] sm:$0xff]
        %v643 = vld [vmem:[#allocation10 + $0x188] sm:$0xff]
        %v644 = vld [vmem:[#allocation10 + $0x190] sm:$0xff]
        %v645 = vld [vmem:[#allocation10 + $0x198] sm:$0xff]
        %v646 = vld [vmem:[#allocation10 + $0x1a0] sm:$0xff]
        %v647 = vld [vmem:[#allocation10 + $0x1a8] sm:$0xff]
        %v648 = vld [vmem:[#allocation10 + $0x1b0] sm:$0xff]
        %v649 = vld [vmem:[#allocation10 + $0x1b8] sm:$0xff]
        %v650 = vld [vmem:[#allocation10 + $0x1c0] sm:$0xff]
        %v651 = vld [vmem:[#allocation10 + $0x1c8] sm:$0xff]
        %v652 = vld [vmem:[#allocation10 + $0x1d0] sm:$0xff]
        %v653 = vld [vmem:[#allocation10 + $0x1d8] sm:$0xff]
        %v654 = vld [vmem:[#allocation10 + $0x1e0] sm:$0xff]
        %v655 = vld [vmem:[#allocation10 + $0x1e8] sm:$0xff]
        %v656 = vld [vmem:[#allocation10 + $0x1f0] sm:$0xff]
        %v657 = vld [vmem:[#allocation10 + $0x1f8] sm:$0xff]
        %v658 = vld [vmem:[#allocation10 + $0x200] sm:$0xff]
        %v659 = vld [vmem:[#allocation10 + $0x208] sm:$0xff]
        %v660 = vld [vmem:[#allocation10 + $0x210] sm:$0xff]
        %v661 = vld [vmem:[#allocation10 + $0x218] sm:$0xff]
        %v662 = vld [vmem:[#allocation10 + $0x220] sm:$0xff]
        %v663 = vld [vmem:[#allocation10 + $0x228] sm:$0xff]
        %v664 = vld [vmem:[#allocation10 + $0x230] sm:$0xff]
        %v665 = vld [vmem:[#allocation10 + $0x238] sm:$0xff]
        %v666 = vld [vmem:[#allocation10 + $0x240] sm:$0xff]
        %v667 = vld [vmem:[#allocation10 + $0x248] sm:$0xff]
        %v668 = vld [vmem:[#allocation10 + $0x250] sm:$0xff]
        %v669 = vld [vmem:[#allocation10 + $0x258] sm:$0xff]
        %v670 = vld [vmem:[#allocation10 + $0x260] sm:$0xff]
        %v671 = vld [vmem:[#allocation10 + $0x268] sm:$0xff]
        %v672 = vld [vmem:[#allocation10 + $0x270] sm:$0xff]
        %v673 = vld [vmem:[#allocation10 + $0x278] sm:$0xff]
        %v674 = vld [vmem:[#allocation10 + $0x280] sm:$0xff]
        %v675 = vld [vmem:[#allocation10 + $0x288] sm:$0xff]
        %v676 = vld [vmem:[#allocation10 + $0x290] sm:$0xff]
        %v677 = vld [vmem:[#allocation10 + $0x298] sm:$0xff]
        %v678 = vld [vmem:[#allocation10 + $0x2a0] sm:$0xff]
        %v679 = vld [vmem:[#allocation10 + $0x2a8] sm:$0xff]
        %v680 = vld [vmem:[#allocation10 + $0x2b0] sm:$0xff]
        %v681 = vld [vmem:[#allocation10 + $0x2b8] sm:$0xff]
        %v682 = vld [vmem:[#allocation10 + $0x2c0] sm:$0xff]
        %v683 = vld [vmem:[#allocation10 + $0x2c8] sm:$0xff]
        %v684 = vld [vmem:[#allocation10 + $0x2d0] sm:$0xff]
        %v685 = vld [vmem:[#allocation10 + $0x2d8] sm:$0xff]
        %v686 = vld [vmem:[#allocation10 + $0x2e0] sm:$0xff]
        %v687 = vld [vmem:[#allocation10 + $0x2e8] sm:$0xff]
        %v688 = vld [vmem:[#allocation10 + $0x2f0] sm:$0xff]
        %v689 = vld [vmem:[#allocation10 + $0x2f8] sm:$0xff]
        %v690 = vld [vmem:[#allocation10 + $0x300] sm:$0xff]
        %v691 = vld [vmem:[#allocation10 + $0x308] sm:$0xff]
        %v692 = vld [vmem:[#allocation10 + $0x310] sm:$0xff]
        %v693 = vld [vmem:[#allocation10 + $0x318] sm:$0xff]
        %v694 = vld [vmem:[#allocation10 + $0x320] sm:$0xff]
        %v695 = vld [vmem:[#allocation10 + $0x328] sm:$0xff]
        %v696 = vld [vmem:[#allocation10 + $0x330] sm:$0xff]
        %v697 = vld [vmem:[#allocation10 + $0x338] sm:$0xff]
        %v698 = vld [vmem:[#allocation10 + $0x340] sm:$0xff]
        %v699 = vld [vmem:[#allocation10 + $0x348] sm:$0xff]
        %v700 = vld [vmem:[#allocation10 + $0x350] sm:$0xff]
        %v701 = vld [vmem:[#allocation10 + $0x358] sm:$0xff]
        %v702 = vld [vmem:[#allocation10 + $0x360] sm:$0xff]
        %v703 = vld [vmem:[#allocation10 + $0x368] sm:$0xff]
        %v704 = vld [vmem:[#allocation10 + $0x370] sm:$0xff]
        %v705 = vld [vmem:[#allocation10 + $0x378] sm:$0xff]
        %v706 = vld [vmem:[#allocation10 + $0x380] sm:$0xff]
        %v707 = vld [vmem:[#allocation10 + $0x388] sm:$0xff]
        %v708 = vld [vmem:[#allocation10 + $0x390] sm:$0xff]
        %v709 = vld [vmem:[#allocation10 + $0x398] sm:$0xff]
        %v710 = vld [vmem:[#allocation10 + $0x3a0] sm:$0xff]
        %v711 = vld [vmem:[#allocation10 + $0x3a8] sm:$0xff]
        %v712 = vld [vmem:[#allocation10 + $0x3b0] sm:$0xff]
        %v713 = vld [vmem:[#allocation10 + $0x3b8] sm:$0xff]
        %v714 = vld [vmem:[#allocation10 + $0x3c0] sm:$0xff]
        %v715 = vld [vmem:[#allocation10 + $0x3c8] sm:$0xff]
        %v716 = vld [vmem:[#allocation10 + $0x3d0] sm:$0xff]
        %v717 = vld [vmem:[#allocation10 + $0x3d8] sm:$0xff]
        %v718 = vld [vmem:[#allocation10 + $0x3e0] sm:$0xff]
        %v719 = vld [vmem:[#allocation10 + $0x3e8] sm:$0xff]
        %v720 = vld [vmem:[#allocation10 + $0x3f0] sm:$0xff]
        %v721 = vld [vmem:[#allocation10 + $0x3f8] sm:$0xff]
        %v722 = vld [vmem:[#allocation11] sm:$0xff]
        %v724 = vlaneseq
        %v725 = vshrl.u32 %v724, 7
        %v726 = vsub.s32 0, %v725
        %v727 = vrot.slane %v722, %v726
        %v728 = vlaneseq
        %v729 = vshrl.u32 %v728, 7
        %v730 = vsub.s32 1, %v729
        %v731 = vrot.slane %v722, %v730
        %v732 = vlaneseq
        %v733 = vshrl.u32 %v732, 7
        %v734 = vsub.s32 2, %v733
        %v735 = vrot.slane %v722, %v734
        %v736 = vlaneseq
        %v737 = vshrl.u32 %v736, 7
        %v738 = vsub.s32 3, %v737
        %v739 = vrot.slane %v722, %v738
        %v740 = vlaneseq
        %v741 = vshrl.u32 %v740, 7
        %v742 = vsub.s32 4, %v741
        %v743 = vrot.slane %v722, %v742
        %v744 = vlaneseq
        %v745 = vshrl.u32 %v744, 7
        %v746 = vsub.s32 5, %v745
        %v747 = vrot.slane %v722, %v746
        %v748 = vlaneseq
        %v749 = vshrl.u32 %v748, 7
        %v750 = vsub.s32 6, %v749
        %v751 = vrot.slane %v722, %v750
        %v752 = vlaneseq
        %v753 = vshrl.u32 %v752, 7
        %v754 = vsub.s32 7, %v753
        %v755 = vrot.slane %v722, %v754
        %764 = vmatprep.subr.mxu0 %v595
        %765 = vmatpush1.msra.mxu0 %v594
        %766 = vmatprep.subr.mxu0 %v603
        %767 = vmatpush1.msra.mxu0 %v602
        %768 = vmatprep.subr.mxu0 %v611
        %769 = vmatpush1.msra.mxu0 %v610
        %770 = vmatprep.subr.mxu0 %v619
        %771 = vmatpush1.msra.mxu0 %v618
        %772 = vmatprep.subr.mxu0 %v627
        %773 = vmatpush1.msra.mxu0 %v626
        %774 = vmatprep.subr.mxu0 %v635
        %775 = vmatpush1.msra.mxu0 %v634
        %776 = vmatprep.subr.mxu0 %v643
        %777 = vmatpush1.msra.mxu0 %v642
        %778 = vmatprep.subr.mxu0 %v651
        %779 = vmatpush1.msra.mxu0 %v650
        %780 = vmatprep.subr.mxu0 %v659
        %781 = vmatpush1.msra.mxu0 %v658
        %782 = vmatprep.subr.mxu0 %v667
        %783 = vmatpush1.msra.mxu0 %v666
        %784 = vmatprep.subr.mxu0 %v675
        %785 = vmatpush1.msra.mxu0 %v674
        %786 = vmatprep.subr.mxu0 %v683
        %787 = vmatpush1.msra.mxu0 %v682
        %788 = vmatprep.subr.mxu0 %v691
        %789 = vmatpush1.msra.mxu0 %v690
        %790 = vmatprep.subr.mxu0 %v699
        %791 = vmatpush1.msra.mxu0 %v698
        %792 = vmatprep.subr.mxu0 %v707
        %793 = vmatpush1.msra.mxu0 %v706
        %794 = vmatprep.subr.mxu0 %v715
        %795 = vmatpush1.msra.mxu0 %v714
        %796 = vmatprep.subr.mxu0 0.0
        %797 = vmatpush1.msra.mxu0 0.0
        %798 = vmatprep.subr.mxu0 0.0
        %799 = vmatpush1.msra.mxu0 0.0
        %800 = vmatprep.subr.mxu0 0.0
        %801 = vmatpush1.msra.mxu0 0.0
        %802 = vmatprep.subr.mxu0 0.0
        %803 = vmatpush1.msra.mxu0 0.0
        %804 = vmatprep.subr.mxu0 0.0
        %805 = vmatpush1.msra.mxu0 0.0
        %806 = vmatprep.subr.mxu0 0.0
        %807 = vmatpush1.msra.mxu0 0.0
        %808 = vmatprep.subr.mxu0 0.0
        %809 = vmatpush1.msra.mxu0 0.0
        %810 = vmatprep.subr.mxu0 0.0
        %811 = vmatpush1.msra.mxu0 0.0
        %812 = vmatprep.subr.mxu0 0.0
        %813 = vmatpush1.msra.mxu0 0.0
        %814 = vmatprep.subr.mxu0 0.0
        %815 = vmatpush1.msra.mxu0 0.0
        %816 = vmatprep.subr.mxu0 0.0
        %817 = vmatpush1.msra.mxu0 0.0
        %818 = vmatprep.subr.mxu0 0.0
        %819 = vmatpush1.msra.mxu0 0.0
        %820 = vmatprep.subr.mxu0 0.0
        %821 = vmatpush1.msra.mxu0 0.0
        %822 = vmatprep.subr.mxu0 0.0
        %823 = vmatpush1.msra.mxu0 0.0
        %824 = vmatprep.subr.mxu0 0.0
        %825 = vmatpush1.msra.mxu0 0.0
        %826 = vmatprep.subr.mxu0 0.0
        %827 = vmatpush1.msra.mxu0 0.0
        %828 = vmatprep.mubr.f32.mxu0 0.0
        %829 = vmatmul.mubr.f32.gmra.mrb[0].mxu0 %v592
        %v830 = vpop.f32.mrb[0].mxu0
        %v831 = vadd.f32 %v727, %v830
        %v832 = vpop.f32.mrb[0].mxu0
        %v833 = vadd.f32 %v731, %v832
        %834 = vmatprep.mubr.f32.mxu0 0.0
        %835 = vmatmul.mubr.f32.gmra.mrb[0].mxu0 %v593
        %v836 = vpop.f32.mrb[0].mxu0
        %v837 = vadd.f32 %v727, %v836
        %v838 = vpop.f32.mrb[0].mxu0
        %v839 = vadd.f32 %v731, %v838
        %840 = vdwg.mxu0
        %841 = vmatprep.subr.mxu0 %v597
        %842 = vmatpush1.msra.mxu0 %v596
        %843 = vmatprep.subr.mxu0 %v605
        %844 = vmatpush1.msra.mxu0 %v604
        %845 = vmatprep.subr.mxu0 %v613
        %846 = vmatpush1.msra.mxu0 %v612
        %847 = vmatprep.subr.mxu0 %v621
        %848 = vmatpush1.msra.mxu0 %v620
        %849 = vmatprep.subr.mxu0 %v629
        %850 = vmatpush1.msra.mxu0 %v628
        %851 = vmatprep.subr.mxu0 %v637
        %852 = vmatpush1.msra.mxu0 %v636
        %853 = vmatprep.subr.mxu0 %v645
        %854 = vmatpush1.msra.mxu0 %v644
        %855 = vmatprep.subr.mxu0 %v653
        %856 = vmatpush1.msra.mxu0 %v652
        %857 = vmatprep.subr.mxu0 %v661
        %858 = vmatpush1.msra.mxu0 %v660
        %859 = vmatprep.subr.mxu0 %v669
        %860 = vmatpush1.msra.mxu0 %v668
        %861 = vmatprep.subr.mxu0 %v677
        %862 = vmatpush1.msra.mxu0 %v676
        %863 = vmatprep.subr.mxu0 %v685
        %864 = vmatpush1.msra.mxu0 %v684
        %865 = vmatprep.subr.mxu0 %v693
        %866 = vmatpush1.msra.mxu0 %v692
        %867 = vmatprep.subr.mxu0 %v701
        %868 = vmatpush1.msra.mxu0 %v700
        %869 = vmatprep.subr.mxu0 %v709
        %870 = vmatpush1.msra.mxu0 %v708
        %871 = vmatprep.subr.mxu0 %v717
        %872 = vmatpush1.msra.mxu0 %v716
        %873 = vmatprep.subr.mxu0 0.0
        %874 = vmatpush1.msra.mxu0 0.0
        %875 = vmatprep.subr.mxu0 0.0
        %876 = vmatpush1.msra.mxu0 0.0
        %877 = vmatprep.subr.mxu0 0.0
        %878 = vmatpush1.msra.mxu0 0.0
        %879 = vmatprep.subr.mxu0 0.0
        %880 = vmatpush1.msra.mxu0 0.0
        %881 = vmatprep.subr.mxu0 0.0
        %882 = vmatpush1.msra.mxu0 0.0
        %883 = vmatprep.subr.mxu0 0.0
        %884 = vmatpush1.msra.mxu0 0.0
        %885 = vmatprep.subr.mxu0 0.0
        %886 = vmatpush1.msra.mxu0 0.0
        %887 = vmatprep.subr.mxu0 0.0
        %888 = vmatpush1.msra.mxu0 0.0
        %889 = vmatprep.subr.mxu0 0.0
        %890 = vmatpush1.msra.mxu0 0.0
        %891 = vmatprep.subr.mxu0 0.0
        %892 = vmatpush1.msra.mxu0 0.0
        %893 = vmatprep.subr.mxu0 0.0
        %894 = vmatpush1.msra.mxu0 0.0
        %895 = vmatprep.subr.mxu0 0.0
        %896 = vmatpush1.msra.mxu0 0.0
        %897 = vmatprep.subr.mxu0 0.0
        %898 = vmatpush1.msra.mxu0 0.0
        %899 = vmatprep.subr.mxu0 0.0
        %900 = vmatpush1.msra.mxu0 0.0
        %901 = vmatprep.subr.mxu0 0.0
        %902 = vmatpush1.msra.mxu0 0.0
        %903 = vmatprep.subr.mxu0 0.0
        %904 = vmatpush1.msra.mxu0 0.0
        %905 = vmatprep.mubr.f32.mxu0 0.0
        %906 = vmatmul.mubr.f32.gmra.mrb[0].mxu0 %v592
        %v907 = vpop.f32.mrb[0].mxu0
        %v908 = vadd.f32 %v735, %v907
        %v909 = vpop.f32.mrb[0].mxu0
        %v910 = vadd.f32 %v739, %v909
        %911 = vmatprep.mubr.f32.mxu0 0.0
        %912 = vmatmul.mubr.f32.gmra.mrb[0].mxu0 %v593
        %v913 = vpop.f32.mrb[0].mxu0
        %v914 = vadd.f32 %v735, %v913
        %v915 = vpop.f32.mrb[0].mxu0
        %v916 = vadd.f32 %v739, %v915
        %917 = vdwg.mxu0
        %918 = vmatprep.subr.mxu0 %v599
        %919 = vmatpush1.msra.mxu0 %v598
        %920 = vmatprep.subr.mxu0 %v607
        %921 = vmatpush1.msra.mxu0 %v606
        %922 = vmatprep.subr.mxu0 %v615
        %923 = vmatpush1.msra.mxu0 %v614
        %924 = vmatprep.subr.mxu0 %v623
        %925 = vmatpush1.msra.mxu0 %v622
        %926 = vmatprep.subr.mxu0 %v631
        %927 = vmatpush1.msra.mxu0 %v630
        %928 = vmatprep.subr.mxu0 %v639
        %929 = vmatpush1.msra.mxu0 %v638
        %930 = vmatprep.subr.mxu0 %v647
        %931 = vmatpush1.msra.mxu0 %v646
        %932 = vmatprep.subr.mxu0 %v655
        %933 = vmatpush1.msra.mxu0 %v654
        %934 = vmatprep.subr.mxu0 %v663
        %935 = vmatpush1.msra.mxu0 %v662
        %936 = vmatprep.subr.mxu0 %v671
        %937 = vmatpush1.msra.mxu0 %v670
        %938 = vmatprep.subr.mxu0 %v679
        %939 = vmatpush1.msra.mxu0 %v678
        %940 = vmatprep.subr.mxu0 %v687
        %941 = vmatpush1.msra.mxu0 %v686
        %942 = vmatprep.subr.mxu0 %v695
        %943 = vmatpush1.msra.mxu0 %v694
        %944 = vmatprep.subr.mxu0 %v703
        %945 = vmatpush1.msra.mxu0 %v702
        %946 = vmatprep.subr.mxu0 %v711
        %947 = vmatpush1.msra.mxu0 %v710
        %948 = vmatprep.subr.mxu0 %v719
        %949 = vmatpush1.msra.mxu0 %v718
        %950 = vmatprep.subr.mxu0 0.0
        %951 = vmatpush1.msra.mxu0 0.0
        %952 = vmatprep.subr.mxu0 0.0
        %953 = vmatpush1.msra.mxu0 0.0
        %954 = vmatprep.subr.mxu0 0.0
        %955 = vmatpush1.msra.mxu0 0.0
        %956 = vmatprep.subr.mxu0 0.0
        %957 = vmatpush1.msra.mxu0 0.0
        %958 = vmatprep.subr.mxu0 0.0
        %959 = vmatpush1.msra.mxu0 0.0
        %960 = vmatprep.subr.mxu0 0.0
        %961 = vmatpush1.msra.mxu0 0.0
        %962 = vmatprep.subr.mxu0 0.0
        %963 = vmatpush1.msra.mxu0 0.0
        %964 = vmatprep.subr.mxu0 0.0
        %965 = vmatpush1.msra.mxu0 0.0
        %966 = vmatprep.subr.mxu0 0.0
        %967 = vmatpush1.msra.mxu0 0.0
        %968 = vmatprep.subr.mxu0 0.0
        %969 = vmatpush1.msra.mxu0 0.0
        %970 = vmatprep.subr.mxu0 0.0
        %971 = vmatpush1.msra.mxu0 0.0
        %972 = vmatprep.subr.mxu0 0.0
        %973 = vmatpush1.msra.mxu0 0.0
        %974 = vmatprep.subr.mxu0 0.0
        %975 = vmatpush1.msra.mxu0 0.0
        %976 = vmatprep.subr.mxu0 0.0
        %977 = vmatpush1.msra.mxu0 0.0
        %978 = vmatprep.subr.mxu0 0.0
        %979 = vmatpush1.msra.mxu0 0.0
        %980 = vmatprep.subr.mxu0 0.0
        %981 = vmatpush1.msra.mxu0 0.0
        %982 = vmatprep.mubr.f32.mxu0 0.0
        %983 = vmatmul.mubr.f32.gmra.mrb[0].mxu0 %v592
        %v984 = vpop.f32.mrb[0].mxu0
        %v985 = vadd.f32 %v743, %v984
        %v986 = vpop.f32.mrb[0].mxu0
        %v987 = vadd.f32 %v747, %v986
        %988 = vmatprep.mubr.f32.mxu0 0.0
        %989 = vmatmul.mubr.f32.gmra.mrb[0].mxu0 %v593
        %v990 = vpop.f32.mrb[0].mxu0
        %v991 = vadd.f32 %v743, %v990
        %v992 = vpop.f32.mrb[0].mxu0
        %v993 = vadd.f32 %v747, %v992
        %994 = vdwg.mxu0
        %995 = vmatprep.subr.mxu0 %v601
        %996 = vmatpush1.msra.mxu0 %v600
        %997 = vmatprep.subr.mxu0 %v609
        %998 = vmatpush1.msra.mxu0 %v608
        %999 = vmatprep.subr.mxu0 %v617
        %1000 = vmatpush1.msra.mxu0 %v616
        %1001 = vmatprep.subr.mxu0 %v625
        %1002 = vmatpush1.msra.mxu0 %v624
        %1003 = vmatprep.subr.mxu0 %v633
        %1004 = vmatpush1.msra.mxu0 %v632
        %1005 = vmatprep.subr.mxu0 %v641
        %1006 = vmatpush1.msra.mxu0 %v640
        %1007 = vmatprep.subr.mxu0 %v649
        %1008 = vmatpush1.msra.mxu0 %v648
        %1009 = vmatprep.subr.mxu0 %v657
        %1010 = vmatpush1.msra.mxu0 %v656
        %1011 = vmatprep.subr.mxu0 %v665
        %1012 = vmatpush1.msra.mxu0 %v664
        %1013 = vmatprep.subr.mxu0 %v673
        %1014 = vmatpush1.msra.mxu0 %v672
        %1015 = vmatprep.subr.mxu0 %v681
        %1016 = vmatpush1.msra.mxu0 %v680
        %1017 = vmatprep.subr.mxu0 %v689
        %1018 = vmatpush1.msra.mxu0 %v688
        %1019 = vmatprep.subr.mxu0 %v697
        %1020 = vmatpush1.msra.mxu0 %v696
        %1021 = vmatprep.subr.mxu0 %v705
        %1022 = vmatpush1.msra.mxu0 %v704
        %1023 = vmatprep.subr.mxu0 %v713
        %1024 = vmatpush1.msra.mxu0 %v712
        %1025 = vmatprep.subr.mxu0 %v721
        %1026 = vmatpush1.msra.mxu0 %v720
        %1027 = vmatprep.subr.mxu0 0.0
        %1028 = vmatpush1.msra.mxu0 0.0
        %1029 = vmatprep.subr.mxu0 0.0
        %1030 = vmatpush1.msra.mxu0 0.0
        %1031 = vmatprep.subr.mxu0 0.0
        %1032 = vmatpush1.msra.mxu0 0.0
        %1033 = vmatprep.subr.mxu0 0.0
        %1034 = vmatpush1.msra.mxu0 0.0
        %1035 = vmatprep.subr.mxu0 0.0
        %1036 = vmatpush1.msra.mxu0 0.0
        %1037 = vmatprep.subr.mxu0 0.0
        %1038 = vmatpush1.msra.mxu0 0.0
        %1039 = vmatprep.subr.mxu0 0.0
        %1040 = vmatpush1.msra.mxu0 0.0
        %1041 = vmatprep.subr.mxu0 0.0
        %1042 = vmatpush1.msra.mxu0 0.0
        %1043 = vmatprep.subr.mxu0 0.0
        %1044 = vmatpush1.msra.mxu0 0.0
        %1045 = vmatprep.subr.mxu0 0.0
        %1046 = vmatpush1.msra.mxu0 0.0
        %1047 = vmatprep.subr.mxu0 0.0
        %1048 = vmatpush1.msra.mxu0 0.0
        %1049 = vmatprep.subr.mxu0 0.0
        %1050 = vmatpush1.msra.mxu0 0.0
        %1051 = vmatprep.subr.mxu0 0.0
        %1052 = vmatpush1.msra.mxu0 0.0
        %1053 = vmatprep.subr.mxu0 0.0
        %1054 = vmatpush1.msra.mxu0 0.0
        %1055 = vmatprep.subr.mxu0 0.0
        %1056 = vmatpush1.msra.mxu0 0.0
        %1057 = vmatprep.subr.mxu0 0.0
        %1058 = vmatpush1.msra.mxu0 0.0
        %1059 = vmatprep.mubr.f32.mxu0 0.0
        %1060 = vmatmul.mubr.f32.gmra.mrb[0].mxu0 %v592
        %v1061 = vpop.f32.mrb[0].mxu0
        %v1062 = vadd.f32 %v751, %v1061
        %v1063 = vpop.f32.mrb[0].mxu0
        %v1064 = vadd.f32 %v755, %v1063
        %1065 = vmatprep.mubr.f32.mxu0 0.0
        %1066 = vmatmul.mubr.f32.gmra.mrb[0].mxu0 %v593
        %v1067 = vpop.f32.mrb[0].mxu0
        %v1068 = vadd.f32 %v751, %v1067
        %v1069 = vpop.f32.mrb[0].mxu0
        %v1070 = vadd.f32 %v755, %v1069
        %1071 = vdwg.mxu0
        %v1072 = vmax.f32 %v831, 0.0
        %v1073 = vmax.f32 %v833, 0.0
        %v1074 = vmax.f32 %v908, 0.0
        %v1075 = vmax.f32 %v910, 0.0
        %v1076 = vmax.f32 %v985, 0.0
        %v1077 = vmax.f32 %v987, 0.0
        %v1078 = vmax.f32 %v1062, 0.0
        %v1079 = vmax.f32 %v1064, 0.0
        %v1080 = vmax.f32 %v837, 0.0
        %v1081 = vmax.f32 %v839, 0.0
        %v1082 = vmax.f32 %v914, 0.0
        %v1083 = vmax.f32 %v916, 0.0
        %v1084 = vmax.f32 %v991, 0.0
        %v1085 = vmax.f32 %v993, 0.0
        %v1086 = vmax.f32 %v1068, 0.0
        %v1087 = vmax.f32 %v1070, 0.0
        %v1088 = vmax.f32 %v1072, %v1080
        %v1089 = vmax.f32 %v1073, %v1081
        %v1090 = vmax.f32 %v1074, %v1082
        %v1091 = vmax.f32 %v1075, %v1083
        %v1092 = vmax.f32 %v1076, %v1084
        %v1093 = vmax.f32 %v1077, %v1085
        %v1094 = vmax.f32 %v1078, %v1086
        %v1095 = vmax.f32 %v1079, %v1087
        %v1096 = vld [vmem:[#allocation2] sm:$0xff]
        %v1097 = vld [vmem:[#allocation2 + $0x8] sm:$0xff]
        %v1098 = vld [vmem:[#allocation2 + $0x10] sm:$0xff]
        %v1099 = vld [vmem:[#allocation2 + $0x18] sm:$0xff]
        %v1100 = vld [vmem:[#allocation2 + $0x20] sm:$0xff]
        %v1101 = vld [vmem:[#allocation2 + $0x28] sm:$0xff]
        %v1102 = vld [vmem:[#allocation2 + $0x30] sm:$0xff]
        %v1103 = vld [vmem:[#allocation2 + $0x38] sm:$0xff]
        %v1104 = vmax.f32 %v1096, %v1088
        %v1105 = vmax.f32 %v1097, %v1089
        %v1106 = vmax.f32 %v1098, %v1090
        %v1107 = vmax.f32 %v1099, %v1091
        %v1108 = vmax.f32 %v1100, %v1092
        %v1109 = vmax.f32 %v1101, %v1093
        %v1110 = vmax.f32 %v1102, %v1094
        %v1111 = vmax.f32 %v1103, %v1095
        %1112 = vst [vmem:[#allocation2] sm:$0xff] %v1104
        %1113 = vst [vmem:[#allocation2 + $0x8] sm:$0xff] %v1105
        %1114 = vst [vmem:[#allocation2 + $0x10] sm:$0xff] %v1106
        %1115 = vst [vmem:[#allocation2 + $0x18] sm:$0xff] %v1107
        %1116 = vst [vmem:[#allocation2 + $0x20] sm:$0xff] %v1108
        %1117 = vst [vmem:[#allocation2 + $0x28] sm:$0xff] %v1109
        %1118 = vst [vmem:[#allocation2 + $0x30] sm:$0xff] %v1110
        %1119 = vst [vmem:[#allocation2 + $0x38] sm:$0xff] %v1111
        // Predicated region
        $region77: #{pointnet_cls_forward.2} parent=47 // pred_check
          %p1120 = pneg %p385
        $region78: #{pointnet_cls_forward.2} parent=47 // pred_check_branch
          %1122 = sbr.rel (%p1120) target = $region80
        $region79: #{pointnet_cls_forward.2} parent=47 // pred_region
          %v1123 = vld [vmem:[#allocation2] sm:$0xff]
          %v1124 = vld [vmem:[#allocation2 + $0x8] sm:$0xff]
          %v1125 = vld [vmem:[#allocation2 + $0x10] sm:$0xff]
          %v1126 = vld [vmem:[#allocation2 + $0x18] sm:$0xff]
          %v1127 = vld [vmem:[#allocation2 + $0x20] sm:$0xff]
          %v1128 = vld [vmem:[#allocation2 + $0x28] sm:$0xff]
          %v1129 = vld [vmem:[#allocation2 + $0x30] sm:$0xff]
          %v1130 = vld [vmem:[#allocation2 + $0x38] sm:$0xff]
          %v1131 = vrot.slane %v1123, 4
          %v1132 = vmax.f32 %v1123, %v1131
          %v1133 = vrot.slane %v1132, 2
          %v1134 = vmax.f32 %v1132, %v1133
          %v1135 = vrot.slane %v1134, 1
          %v1136 = vmax.f32 %v1134, %v1135
          %v1137 = vrot.slane %v1124, 4
          %v1138 = vmax.f32 %v1124, %v1137
          %v1139 = vrot.slane %v1138, 2
          %v1140 = vmax.f32 %v1138, %v1139
          %v1141 = vrot.slane %v1140, 1
          %v1142 = vmax.f32 %v1140, %v1141
          %v1143 = vrot.slane %v1125, 4
          %v1144 = vmax.f32 %v1125, %v1143
          %v1145 = vrot.slane %v1144, 2
          %v1146 = vmax.f32 %v1144, %v1145
          %v1147 = vrot.slane %v1146, 1
          %v1148 = vmax.f32 %v1146, %v1147
          %v1149 = vrot.slane %v1126, 4
          %v1150 = vmax.f32 %v1126, %v1149
          %v1151 = vrot.slane %v1150, 2
          %v1152 = vmax.f32 %v1150, %v1151
          %v1153 = vrot.slane %v1152, 1
          %v1154 = vmax.f32 %v1152, %v1153
          %v1155 = vrot.slane %v1127, 4
          %v1156 = vmax.f32 %v1127, %v1155
          %v1157 = vrot.slane %v1156, 2
          %v1158 = vmax.f32 %v1156, %v1157
          %v1159 = vrot.slane %v1158, 1
          %v1160 = vmax.f32 %v1158, %v1159
          %v1161 = vrot.slane %v1128, 4
          %v1162 = vmax.f32 %v1128, %v1161
          %v1163 = vrot.slane %v1162, 2
          %v1164 = vmax.f32 %v1162, %v1163
          %v1165 = vrot.slane %v1164, 1
          %v1166 = vmax.f32 %v1164, %v1165
          %v1167 = vrot.slane %v1129, 4
          %v1168 = vmax.f32 %v1129, %v1167
          %v1169 = vrot.slane %v1168, 2
          %v1170 = vmax.f32 %v1168, %v1169
          %v1171 = vrot.slane %v1170, 1
          %v1172 = vmax.f32 %v1170, %v1171
          %v1173 = vrot.slane %v1130, 4
          %v1174 = vmax.f32 %v1130, %v1173
          %v1175 = vrot.slane %v1174, 2
          %v1176 = vmax.f32 %v1174, %v1175
          %v1177 = vrot.slane %v1176, 1
          %v1178 = vmax.f32 %v1176, %v1177
          %v1187 = vcombine.low %v1136, %v1142
          %v1188 = vcombine.low %v1148, %v1154
          %v1189 = vcombine.low %v1160, %v1166
          %v1190 = vcombine.low %v1172, %v1178
          %v1192 = vunpack.c.l.s4 1966171168
          %v1193 = vunpack.c.0.s8 %v1192
          %v1194 = vlaneseq
          %v1195 = vshrl.u32 %v1194, 7
          %v1196 = vsub.s32 %v1193, %v1195
          %v1197 = vrot.slane %v1187, %v1196
          %v1199 = vunpack.c.l.s4 1966171168
          %v1200 = vunpack.c.0.s8 %v1199
          %v1201 = vlaneseq
          %v1202 = vshrl.u32 %v1201, 7
          %v1203 = vsub.s32 %v1200, %v1202
          %v1204 = vrot.slane %v1188, %v1203
          %v1206 = vunpack.c.l.s4 1966171168
          %v1207 = vunpack.c.0.s8 %v1206
          %v1208 = vlaneseq
          %v1209 = vshrl.u32 %v1208, 7
          %v1210 = vsub.s32 %v1207, %v1209
          %v1211 = vrot.slane %v1189, %v1210
          %v1213 = vunpack.c.l.s4 1966171168
          %v1214 = vunpack.c.0.s8 %v1213
          %v1215 = vlaneseq
          %v1216 = vshrl.u32 %v1215, 7
          %v1217 = vsub.s32 %v1214, %v1216
          %v1218 = vrot.slane %v1190, %v1217
          %v1219 = vcombine.low %v1197, %v1204
          %v1220 = vcombine.low %v1211, %v1218
          %v1222 = vunpack.c.l.s4 1966171168
          %v1223 = vunpack.c.0.s8 %v1222
          %v1224 = vlaneseq
          %v1225 = vshrl.u32 %v1224, 7
          %v1226 = vsub.s32 %v1223, %v1225
          %v1227 = vrot.slane %v1219, %v1226
          %v1229 = vunpack.c.l.s4 1966171168
          %v1230 = vunpack.c.0.s8 %v1229
          %v1231 = vlaneseq
          %v1232 = vshrl.u32 %v1231, 7
          %v1233 = vsub.s32 %v1230, %v1232
          %v1234 = vrot.slane %v1220, %v1233
          %v1235 = vcombine.low %v1227, %v1234
          %1237 = vst [vmem:[%s384] sm:$0xff] %v1235
        $region80: #{pointnet_cls_forward.2} parent=47 // pred_fallthru
          _
        %p1238 = scmp.lt.s32.totalorder %s26, 1
        %s1239 = scalar_select %p1238, %s26, 1
        %s1240 = smul.addr %s1239, 8
        %s1241 = scalar_lea.vmem %s7, %s1240
        // Predicated region
        $region81: #{pointnet_cls_forward.2} parent=47 // pred_check
          %p1242 = pneg %p206
        $region82: #{pointnet_cls_forward.2} parent=47 // pred_check_branch
          %1244 = sbr.rel (%p1242) target = $region84
        $region83: #{pointnet_cls_forward.2} parent=47 // pred_region
          _
        $region84: #{pointnet_cls_forward.2} parent=47 // pred_fallthru
          _
      $region48: #{pointnet_cls_forward.2} parent=5 // pred_fallthru
        _
      %p1245 = scmp.le.s32.totalorder 2, %s17
      // Predicated region
      $region85: #{pointnet_cls_forward.2} parent=5 // pred_check
        %p1246 = pneg %p1245
      $region86: #{pointnet_cls_forward.2} parent=5 // pred_check_branch
        %1248 = sbr.rel (%p1246) target = $region88
      $region87: #{pointnet_cls_forward.2} parent=5 // pred_region
        %s1249 = ssub.s32 %s17, 2
        // Predicated region
        $region89: #{pointnet_cls_forward.2} parent=87 // pred_check
          %p1250 = pneg %p212
        $region90: #{pointnet_cls_forward.2} parent=87 // pred_check_branch
          %1252 = sbr.rel (%p1250) target = $region92
        $region91: #{pointnet_cls_forward.2} parent=87 // pred_region
          %p1253 = scmp.lt.s32.totalorder %s28, 1
          %s1254 = scalar_select %p1253, %s28, 1
          %s1255 = smul.addr %s1254, 8
          %s1256 = scalar_lea.vmem %s7, %s1255
        $region92: #{pointnet_cls_forward.2} parent=87 // pred_fallthru
          _
      $region88: #{pointnet_cls_forward.2} parent=5 // pred_fallthru
        _
    $region6: #{pointnet_cls_forward.2} parent=1 // loop_footer
      %s21 = sadd.s32 1, %s17
    $region7: #{pointnet_cls_forward.2} parent=1 // loop_footer_branch
      %16 = sbr.rel target = $region3
    $region8: #{pointnet_cls_forward.2} parent=1 // loop_exit
      _
    %1257 = vsyncpa [#allocation4], 1
    %s1258 = scalar_lea.sflag [#allocation4], 1
    %1259 = vsyncpa %s1258, 1
    %1260 = vsyncpa [#allocation6], 1
    %1261 = vsyncpa [#allocation9], 1
    %1262 = vsyncpa [#allocation12], 1

// kernel: pointnet_cls_forward.3
$region0: #{pointnet_cls_forward.3}
  #allocation0 [shape = 'u32[]', space=smem, size = 0x4, offset = 0x4, fixed_abs, tag = 'smem constant byte address 0x4 - core index']
  #allocation1 [shape = 'u32[144,128]{1,0:T(1,128)}', space=vmem, size = 0x12000, scoped, tag = 'internal scratch']
  #allocation2 [shape = 'f32[8,1024]{1,0:T(8,128)}', space=vmem, size = 0x8000, scoped, tag = 'scratch operand']
  %s0 = inlined_call_operand.vmem [shape: f32[2,16,3], index: 0, kind: input, shape index: {}]
  %s1 = inlined_call_operand.vmem [shape: f32[3,64], index: 1, kind: input, shape index: {}]
  %s2 = inlined_call_operand.vmem [shape: f32[1,64], index: 2, kind: input, shape index: {}]
  %s3 = inlined_call_operand.vmem [shape: f32[64,128], index: 3, kind: input, shape index: {}]
  %s4 = inlined_call_operand.vmem [shape: f32[1,128], index: 4, kind: input, shape index: {}]
  %s5 = inlined_call_operand.vmem [shape: f32[128,1024], index: 5, kind: input, shape index: {}]
  %s6 = inlined_call_operand.vmem [shape: f32[1,1024], index: 6, kind: input, shape index: {}]
  %s7 = inlined_call_operand.vmem [shape: f32[2,1,1024], index: 7, kind: output, shape index: {}]
  %s8 = sld [smem:[#allocation0]]
  $region69: #{pointnet_cls_forward.3} parent=0
    _
  %s10 = ssub.s32 1, %s8
  %s11 = scalar_select 0, %s10, %s8
  loop: start=0, step=1, limit=4
  $region2: #{pointnet_cls_forward.3} parent=0 // loop_pre_header
    _
  $region3: #{pointnet_cls_forward.3} parent=0 // loop_header
    %s13 = sphi 0, %s17
    %p14 = scmp.ge.s32.totalorder %s13, 4
    %s20 = sphi 0, %s32
    %s21 = sphi 0, %s28
    %s22 = sphi 0, %s20
    %s23 = sphi 0, %s21
    %s24 = sphi 0, %s22
    %s25 = sphi 0, %s23
    %s37 = sphi 0, %s39
    %s40 = sphi 0, %s37
    %s41 = sphi 0, %s40
    %s57 = sphi 0, %s41
    %s61 = sphi 0, %s61
    %s63 = sphi 0, %s61
    %s64 = sphi 0, %s63
    %s78 = sphi 0, %s64
    %s82 = sphi 0, %s82
    %s84 = sphi 0, %s82
    %s85 = sphi 0, %s84
    %s99 = sphi 0, %s85
    %s103 = sphi 0, %s103
    %s105 = sphi 0, %s103
    %s106 = sphi 0, %s105
    %s120 = sphi 0, %s106
    %s124 = sphi 0, %s124
    %s126 = sphi 0, %s124
    %s127 = sphi 0, %s126
    %s141 = sphi 0, %s127
    %s145 = sphi 0, %s145
    %s147 = sphi 0, %s145
    %s148 = sphi 0, %s147
    %s162 = sphi 0, %s148
    %s166 = sphi 0, %s166
    %s168 = sphi 0, %s166
    %s169 = sphi 0, %s168
    %s183 = sphi 0, %s169
    %s189 = sphi 0, %s191
    %s192 = sphi 0, %s189
    %s193 = sphi 0, %s192
    %s209 = sphi 0, %s193
  $region4: #{pointnet_cls_forward.3} parent=0 // loop_header_branch
    %16 = sbr.rel (%p14) target = $region8
  $region5: #{pointnet_cls_forward.3} parent=0 // loop_body
    %s18 = ssub.s32 %s13, 1
    %s19 = ssub.s32 %s13, 2
    %s26 = sadd.s32 1, %s21
    %p27 = scmp.ge.s32.totalorder %s26, 1
    %s28 = scalar_select %p27, 0, %s26
    %s29 = sadd.s32 1, %s20
    %s30 = scalar_select %p27, %s29, %s20
    %p31 = scmp.ge.s32.totalorder %s30, 2
    %s32 = scalar_select %p31, 0, %s30
    %s33 = ssub.s32 %s20, %s32
    %s34 = ssub.s32 %s21, %s28
    %s35 = sor.u32 %s33, %s34
    %p36 = scmp.eq.s32.totalorder %s35, 0
    %s38 = sadd.s32 %s37, 1
    %s39 = scalar_select %p36, %s37, %s38
    %p42 = pneg %p36
    %p43 = scmp.eq.s32.totalorder %s13, 1
    %p44 = por %p42, %p43
    %p45 = scmp.ne.s32.totalorder %s37, %s40
    %p46 = scmp.eq.s32.totalorder %s13, 0
    %p47 = por %p45, %p46
    %p48 = scmp.ne.s32.totalorder %s37, %s40
    %p49 = scmp.eq.s32.totalorder %s18, 1
    %p50 = por %p48, %p49
    %p51 = scmp.ne.s32.totalorder %s40, %s41
    %p52 = scmp.eq.s32.totalorder %s18, 0
    %p53 = por %p51, %p52
    %p54 = scmp.ne.s32.totalorder %s40, %s41
    %p55 = scmp.eq.s32.totalorder %s19, 1
    %p56 = por %p54, %p55
    %p58 = scmp.ne.s32.totalorder %s41, %s57
    %p59 = scmp.eq.s32.totalorder %s19, 0
    %p60 = por %p58, %p59
    %s62 = sadd.s32 %s61, 1
    %p65 = scmp.eq.s32.totalorder %s13, 1
    %p66 = scmp.ne.s32.totalorder %s61, %s63
    %p67 = scmp.eq.s32.totalorder %s13, 0
    %p68 = por %p66, %p67
    %p69 = scmp.ne.s32.totalorder %s61, %s63
    %p70 = scmp.eq.s32.totalorder %s18, 1
    %p71 = por %p69, %p70
    %p72 = scmp.ne.s32.totalorder %s63, %s64
    %p73 = scmp.eq.s32.totalorder %s18, 0
    %p74 = por %p72, %p73
    %p75 = scmp.ne.s32.totalorder %s63, %s64
    %p76 = scmp.eq.s32.totalorder %s19, 1
    %p77 = por %p75, %p76
    %p79 = scmp.ne.s32.totalorder %s64, %s78
    %p80 = scmp.eq.s32.totalorder %s19, 0
    %p81 = por %p79, %p80
    %s83 = sadd.s32 %s82, 1
    %p86 = scmp.eq.s32.totalorder %s13, 1
    %p87 = scmp.ne.s32.totalorder %s82, %s84
    %p88 = scmp.eq.s32.totalorder %s13, 0
    %p89 = por %p87, %p88
    %p90 = scmp.ne.s32.totalorder %s82, %s84
    %p91 = scmp.eq.s32.totalorder %s18, 1
    %p92 = por %p90, %p91
    %p93 = scmp.ne.s32.totalorder %s84, %s85
    %p94 = scmp.eq.s32.totalorder %s18, 0
    %p95 = por %p93, %p94
    %p96 = scmp.ne.s32.totalorder %s84, %s85
    %p97 = scmp.eq.s32.totalorder %s19, 1
    %p98 = por %p96, %p97
    %p100 = scmp.ne.s32.totalorder %s85, %s99
    %p101 = scmp.eq.s32.totalorder %s19, 0
    %p102 = por %p100, %p101
    %s104 = sadd.s32 %s103, 1
    %p107 = scmp.eq.s32.totalorder %s13, 1
    %p108 = scmp.ne.s32.totalorder %s103, %s105
    %p109 = scmp.eq.s32.totalorder %s13, 0
    %p110 = por %p108, %p109
    %p111 = scmp.ne.s32.totalorder %s103, %s105
    %p112 = scmp.eq.s32.totalorder %s18, 1
    %p113 = por %p111, %p112
    %p114 = scmp.ne.s32.totalorder %s105, %s106
    %p115 = scmp.eq.s32.totalorder %s18, 0
    %p116 = por %p114, %p115
    %p117 = scmp.ne.s32.totalorder %s105, %s106
    %p118 = scmp.eq.s32.totalorder %s19, 1
    %p119 = por %p117, %p118
    %p121 = scmp.ne.s32.totalorder %s106, %s120
    %p122 = scmp.eq.s32.totalorder %s19, 0
    %p123 = por %p121, %p122
    %s125 = sadd.s32 %s124, 1
    %p128 = scmp.eq.s32.totalorder %s13, 1
    %p129 = scmp.ne.s32.totalorder %s124, %s126
    %p130 = scmp.eq.s32.totalorder %s13, 0
    %p131 = por %p129, %p130
    %p132 = scmp.ne.s32.totalorder %s124, %s126
    %p133 = scmp.eq.s32.totalorder %s18, 1
    %p134 = por %p132, %p133
    %p135 = scmp.ne.s32.totalorder %s126, %s127
    %p136 = scmp.eq.s32.totalorder %s18, 0
    %p137 = por %p135, %p136
    %p138 = scmp.ne.s32.totalorder %s126, %s127
    %p139 = scmp.eq.s32.totalorder %s19, 1
    %p140 = por %p138, %p139
    %p142 = scmp.ne.s32.totalorder %s127, %s141
    %p143 = scmp.eq.s32.totalorder %s19, 0
    %p144 = por %p142, %p143
    %s146 = sadd.s32 %s145, 1
    %p149 = scmp.eq.s32.totalorder %s13, 1
    %p150 = scmp.ne.s32.totalorder %s145, %s147
    %p151 = scmp.eq.s32.totalorder %s13, 0
    %p152 = por %p150, %p151
    %p153 = scmp.ne.s32.totalorder %s145, %s147
    %p154 = scmp.eq.s32.totalorder %s18, 1
    %p155 = por %p153, %p154
    %p156 = scmp.ne.s32.totalorder %s147, %s148
    %p157 = scmp.eq.s32.totalorder %s18, 0
    %p158 = por %p156, %p157
    %p159 = scmp.ne.s32.totalorder %s147, %s148
    %p160 = scmp.eq.s32.totalorder %s19, 1
    %p161 = por %p159, %p160
    %p163 = scmp.ne.s32.totalorder %s148, %s162
    %p164 = scmp.eq.s32.totalorder %s19, 0
    %p165 = por %p163, %p164
    %s167 = sadd.s32 %s166, 1
    %p170 = scmp.eq.s32.totalorder %s13, 1
    %p171 = scmp.ne.s32.totalorder %s166, %s168
    %p172 = scmp.eq.s32.totalorder %s13, 0
    %p173 = por %p171, %p172
    %p174 = scmp.ne.s32.totalorder %s166, %s168
    %p175 = scmp.eq.s32.totalorder %s18, 1
    %p176 = por %p174, %p175
    %p177 = scmp.ne.s32.totalorder %s168, %s169
    %p178 = scmp.eq.s32.totalorder %s18, 0
    %p179 = por %p177, %p178
    %p180 = scmp.ne.s32.totalorder %s168, %s169
    %p181 = scmp.eq.s32.totalorder %s19, 1
    %p182 = por %p180, %p181
    %p184 = scmp.ne.s32.totalorder %s169, %s183
    %p185 = scmp.eq.s32.totalorder %s19, 0
    %p186 = por %p184, %p185
    %s187 = ssub.s32 %s20, %s32
    %p188 = scmp.eq.s32.totalorder %s187, 0
    %s190 = sadd.s32 %s189, 1
    %s191 = scalar_select %p188, %s189, %s190
    %p194 = pneg %p188
    %p195 = scmp.eq.s32.totalorder %s13, 1
    %p196 = por %p194, %p195
    %p197 = scmp.ne.s32.totalorder %s189, %s192
    %p198 = scmp.eq.s32.totalorder %s13, 0
    %p199 = por %p197, %p198
    %p200 = scmp.ne.s32.totalorder %s189, %s192
    %p201 = scmp.eq.s32.totalorder %s18, 1
    %p202 = por %p200, %p201
    %p203 = scmp.ne.s32.totalorder %s192, %s193
    %p204 = scmp.eq.s32.totalorder %s18, 0
    %p205 = por %p203, %p204
    %p206 = scmp.ne.s32.totalorder %s192, %s193
    %p207 = scmp.eq.s32.totalorder %s19, 1
    %p208 = por %p206, %p207
    %p210 = scmp.ne.s32.totalorder %s193, %s209
    %p211 = scmp.eq.s32.totalorder %s19, 0
    %p212 = por %p210, %p211
    %p213 = scmp.le.s32.totalorder 1, %s13
    %p214 = scmp.lt.s32.totalorder %s13, 3
    %p215 = pnand %p213, %p214
    %p216 = pneg %p215
    // Predicated region
    $region9: #{pointnet_cls_forward.3} parent=5 // pred_check
      _
    $region10: #{pointnet_cls_forward.3} parent=5 // pred_check_branch
      %218 = sbr.rel (%p215) target = $region12
    $region11: #{pointnet_cls_forward.3} parent=5 // pred_region
      %s219 = ssub.s32 %s13, 1
      // Predicated region
      $region13: #{pointnet_cls_forward.3} parent=11 // pred_check
        %p220 = pneg %p74
      $region14: #{pointnet_cls_forward.3} parent=11 // pred_check_branch
        %222 = sbr.rel (%p220) target = $region16
      $region15: #{pointnet_cls_forward.3} parent=11 // pred_region
        _
      $region16: #{pointnet_cls_forward.3} parent=11 // pred_fallthru
        _
      // Predicated region
      $region17: #{pointnet_cls_forward.3} parent=11 // pred_check
        %p223 = pneg %p95
      $region18: #{pointnet_cls_forward.3} parent=11 // pred_check_branch
        %225 = sbr.rel (%p223) target = $region20
      $region19: #{pointnet_cls_forward.3} parent=11 // pred_region
        _
      $region20: #{pointnet_cls_forward.3} parent=11 // pred_fallthru
        _
      // Predicated region
      $region21: #{pointnet_cls_forward.3} parent=11 // pred_check
        %p226 = pneg %p116
      $region22: #{pointnet_cls_forward.3} parent=11 // pred_check_branch
        %228 = sbr.rel (%p226) target = $region24
      $region23: #{pointnet_cls_forward.3} parent=11 // pred_region
        _
      $region24: #{pointnet_cls_forward.3} parent=11 // pred_fallthru
        _
      // Predicated region
      $region25: #{pointnet_cls_forward.3} parent=11 // pred_check
        %p229 = pneg %p137
      $region26: #{pointnet_cls_forward.3} parent=11 // pred_check_branch
        %231 = sbr.rel (%p229) target = $region28
      $region27: #{pointnet_cls_forward.3} parent=11 // pred_region
        _
      $region28: #{pointnet_cls_forward.3} parent=11 // pred_fallthru
        _
      // Predicated region
      $region29: #{pointnet_cls_forward.3} parent=11 // pred_check
        %p232 = pneg %p158
      $region30: #{pointnet_cls_forward.3} parent=11 // pred_check_branch
        %234 = sbr.rel (%p232) target = $region32
      $region31: #{pointnet_cls_forward.3} parent=11 // pred_region
        _
      $region32: #{pointnet_cls_forward.3} parent=11 // pred_fallthru
        _
      // Predicated region
      $region33: #{pointnet_cls_forward.3} parent=11 // pred_check
        %p235 = pneg %p179
      $region34: #{pointnet_cls_forward.3} parent=11 // pred_check_branch
        %237 = sbr.rel (%p235) target = $region36
      $region35: #{pointnet_cls_forward.3} parent=11 // pred_region
        _
      $region36: #{pointnet_cls_forward.3} parent=11 // pred_fallthru
        _
    $region12: #{pointnet_cls_forward.3} parent=5 // pred_fallthru
      _
    %p238 = scmp.lt.s32.totalorder %s13, 2
    // Predicated region
    $region37: #{pointnet_cls_forward.3} parent=5 // pred_check
      %p239 = pneg %p238
    $region38: #{pointnet_cls_forward.3} parent=5 // pred_check_branch
      %241 = sbr.rel (%p239) target = $region40
    $region39: #{pointnet_cls_forward.3} parent=5 // pred_region
      // Predicated region
      $region41: #{pointnet_cls_forward.3} parent=39 // pred_check
        %p242 = pneg %p47
      $region42: #{pointnet_cls_forward.3} parent=39 // pred_check_branch
        %244 = sbr.rel (%p242) target = $region44
      $region43: #{pointnet_cls_forward.3} parent=39 // pred_region
        %s245 = smul.u32 2, %s21
        %p246 = scmp.lt.s32.totalorder %s20, 1
        %s247 = scalar_select %p246, %s20, 1
        %p248 = scmp.lt.s32.totalorder %s245, 1
        %s249 = scalar_select %p248, %s245, 1
        %s250 = smul.addr %s247, 2
        %s251 = sadd.s32 %s249, %s250
        %s252 = smul.addr %s251, 8
        %s253 = scalar_lea.vmem %s0, %s252
        %s254 = smul.u32 2, %s21
      $region44: #{pointnet_cls_forward.3} parent=39 // pred_fallthru
        _
    $region40: #{pointnet_cls_forward.3} parent=5 // pred_fallthru
      _
    %p255 = scmp.le.s32.totalorder 1, %s13
    %p256 = scmp.lt.s32.totalorder %s13, 3
    %p257 = pnand %p255, %p256
    %p258 = pneg %p257
    // Predicated region
    $region45: #{pointnet_cls_forward.3} parent=5 // pred_check
      _
    $region46: #{pointnet_cls_forward.3} parent=5 // pred_check_branch
      %260 = sbr.rel (%p257) target = $region48
    $region47: #{pointnet_cls_forward.3} parent=5 // pred_region
      %s261 = ssub.s32 %s13, 1
      %s262 = smul.u32 2, %s23
      %p263 = scmp.lt.s32.totalorder %s22, 1
      %s264 = scalar_select %p263, %s22, 1
      %p265 = scmp.lt.s32.totalorder %s262, 1
      %s266 = scalar_select %p265, %s262, 1
      %s267 = smul.addr %s264, 2
      %s268 = sadd.s32 %s266, %s267
      %s269 = smul.addr %s268, 8
      %s270 = scalar_lea.vmem %s0, %s269
      %p271 = pneg %p53
      %p272 = pneg %p50
      %p273 = pneg %p74
      %p274 = pneg %p71
      %p275 = pneg %p95
      %p276 = pneg %p92
      %p277 = pneg %p116
      %p278 = pneg %p113
      %p279 = pneg %p137
      %p280 = pneg %p134
      %p281 = pneg %p158
      %p282 = pneg %p155
      %p283 = pneg %p179
      %p284 = pneg %p176
      %p285 = pneg %p205
      %p286 = pneg %p202
      %p287 = scmp.lt.s32.totalorder %s22, 1
      %s288 = scalar_select %p287, %s22, 1
      %s289 = smul.addr %s288, 8
      %s290 = scalar_lea.vmem %s7, %s289
      %s291 = smul.u32 2, %s23
      %p292 = scmp.lt.s32.totalorder %s22, 1
      %s293 = scalar_select %p292, %s22, 1
      %p294 = scmp.lt.s32.totalorder %s291, 1
      %s295 = scalar_select %p294, %s291, 1
      %s296 = smul.addr %s293, 2
      %s297 = sadd.s32 %s295, %s296
      %s298 = smul.addr %s297, 8
      %s299 = scalar_lea.vmem %s0, %s298
      %s300 = smul.u32 2, %s23
      %p301 = scmp.lt.s32.totalorder %s22, 1
      %s302 = scalar_select %p301, %s22, 1
      %s303 = smul.addr %s302, 8
      %s304 = scalar_lea.vmem %s7, %s303
      %p305 = scmp.eq.s32.totalorder %s23, 0
      // Predicated region
      $region49: #{pointnet_cls_forward.3} parent=47 // pred_check
        %p306 = pneg %p305
      $region50: #{pointnet_cls_forward.3} parent=47 // pred_check_branch
        %308 = sbr.rel (%p306) target = $region52
      $region51: #{pointnet_cls_forward.3} parent=47 // pred_region
        %309 = vst [vmem:[#allocation2] sm:$0xff] -inf
        %310 = vst [vmem:[#allocation2 + $0x8] sm:$0xff] -inf
        %311 = vst [vmem:[#allocation2 + $0x10] sm:$0xff] -inf
        %312 = vst [vmem:[#allocation2 + $0x18] sm:$0xff] -inf
        %313 = vst [vmem:[#allocation2 + $0x20] sm:$0xff] -inf
        %314 = vst [vmem:[#allocation2 + $0x28] sm:$0xff] -inf
        %315 = vst [vmem:[#allocation2 + $0x30] sm:$0xff] -inf
        %316 = vst [vmem:[#allocation2 + $0x38] sm:$0xff] -inf
      $region52: #{pointnet_cls_forward.3} parent=47 // pred_fallthru
        _
      %v317 = vld [vmem:[%s299] sm:$0xff]
      %v318 = vld [vmem:[%s299 + $0x8] sm:$0xff]
      %v319 = vld [vmem:[%s1] sm:$0x7]
      %v320 = vld [vmem:[%s2] sm:$0x1]
      %v322 = vlaneseq
      %v323 = vshrl.u32 %v322, 7
      %v324 = vsub.s32 0, %v323
      %v325 = vrot.slane %v320, %v324
      %vm327 = vcmask 23552
      %v329 = vsel %vm327, %v317, 0
      %v332 = vsel %vm327, %v318, 0
      %vm334 = vcmask 1042432
      %v336 = vsel %vm334, %v319, 0
      %338 = vmatprep.subr.mxu0 0.0
      %339 = vmatpush1.msra.mxu0 %v336
      %340 = vmatprep.subr.mxu0 0.0
      %341 = vmatpush1.msra.mxu0 0.0
      %342 = vmatprep.subr.mxu0 0.0
      %343 = vmatpush1.msra.mxu0 0.0
      %344 = vmatprep.subr.mxu0 0.0
      %345 = vmatpush1.msra.mxu0 0.0
      %346 = vmatprep.subr.mxu0 0.0
      %347 = vmatpush1.msra.mxu0 0.0
      %348 = vmatprep.subr.mxu0 0.0
      %349 = vmatpush1.msra.mxu0 0.0
      %350 = vmatprep.subr.mxu0 0.0
      %351 = vmatpush1.msra.mxu0 0.0
      %352 = vmatprep.subr.mxu0 0.0
      %353 = vmatpush1.msra.mxu0 0.0
      %354 = vmatprep.subr.mxu0 0.0
      %355 = vmatpush1.msra.mxu0 0.0
      %356 = vmatprep.subr.mxu0 0.0
      %357 = vmatpush1.msra.mxu0 0.0
      %358 = vmatprep.subr.mxu0 0.0
      %359 = vmatpush1.msra.mxu0 0.0
      %360 = vmatprep.subr.mxu0 0.0
      %361 = vmatpush1.msra.mxu0 0.0
      %362 = vmatprep.subr.mxu0 0.0
      %363 = vmatpush1.msra.mxu0 0.0
      %364 = vmatprep.subr.mxu0 0.0
      %365 = vmatpush1.msra.mxu0 0.0
      %366 = vmatprep.subr.mxu0 0.0
      %367 = vmatpush1.msra.mxu0 0.0
      %368 = vmatprep.subr.mxu0 0.0
      %369 = vmatpush1.msra.mxu0 0.0
      %370 = vmatprep.subr.mxu0 0.0
      %371 = vmatpush1.msra.mxu0 0.0
      %372 = vmatprep.subr.mxu0 0.0
      %373 = vmatpush1.msra.mxu0 0.0
      %374 = vmatprep.subr.mxu0 0.0
      %375 = vmatpush1.msra.mxu0 0.0
      %376 = vmatprep.subr.mxu0 0.0
      %377 = vmatpush1.msra.mxu0 0.0
      %378 = vmatprep.subr.mxu0 0.0
      %379 = vmatpush1.msra.mxu0 0.0
      %380 = vmatprep.subr.mxu0 0.0
      %381 = vmatpush1.msra.mxu0 0.0
      %382 = vmatprep.subr.mxu0 0.0
      %383 = vmatpush1.msra.mxu0 0.0
      %384 = vmatprep.subr.mxu0 0.0
      %385 = vmatpush1.msra.mxu0 0.0
      %386 = vmatprep.subr.mxu0 0.0
      %387 = vmatpush1.msra.mxu0 0.0
      %388 = vmatprep.subr.mxu0 0.0
      %389 = vmatpush1.msra.mxu0 0.0
      %390 = vmatprep.subr.mxu0 0.0
      %391 = vmatpush1.msra.mxu0 0.0
      %392 = vmatprep.subr.mxu0 0.0
      %393 = vmatpush1.msra.mxu0 0.0
      %394 = vmatprep.subr.mxu0 0.0
      %395 = vmatpush1.msra.mxu0 0.0
      %396 = vmatprep.subr.mxu0 0.0
      %397 = vmatpush1.msra.mxu0 0.0
      %398 = vmatprep.subr.mxu0 0.0
      %399 = vmatpush1.msra.mxu0 0.0
      %400 = vmatprep.subr.mxu0 0.0
      %401 = vmatpush1.msra.mxu0 0.0
      %402 = vmatprep.mubr.f32.mxu0 0.0
      %403 = vmatmul.mubr.f32.gmra.mrb[0].mxu0 %v329
      %v404 = vpop.f32.mrb[0].mxu0
      %v405 = vadd.f32 %v325, %v404
      %v406 = vpop.f32.mrb[0].mxu0
      %407 = vmatprep.mubr.f32.mxu0 0.0
      %408 = vmatmul.mubr.f32.gmra.mrb[0].mxu0 %v332
      %v409 = vpop.f32.mrb[0].mxu0
      %v410 = vadd.f32 %v325, %v409
      %v411 = vpop.f32.mrb[0].mxu0
      %412 = vdwg.mxu0
      %v413 = vmax.f32 %v405, 0.0
      %v414 = vmax.f32 %v410, 0.0
      %v415 = vld [vmem:[%s3] sm:$0xff]
      %v416 = vld [vmem:[%s3 + $0x8] sm:$0xff]
      %v417 = vld [vmem:[%s3 + $0x10] sm:$0xff]
      %v418 = vld [vmem:[%s3 + $0x18] sm:$0xff]
      %v419 = vld [vmem:[%s3 + $0x20] sm:$0xff]
      %v420 = vld [vmem:[%s3 + $0x28] sm:$0xff]
      %v421 = vld [vmem:[%s3 + $0x30] sm:$0xff]
      %v422 = vld [vmem:[%s3 + $0x38] sm:$0xff]
      %v423 = vld [vmem:[%s4] sm:$0x1]
      %v425 = vlaneseq
      %v426 = vshrl.u32 %v425, 7
      %v427 = vsub.s32 0, %v426
      %v428 = vrot.slane %v423, %v427
      %vm430 = vcmask 523264
      %v432 = vsel %vm430, %v413, 0
      %v435 = vsel %vm430, %v414, 0
      %437 = vmatprep.subr.mxu0 0.0
      %438 = vmatpush1.msra.mxu0 %v415
      %439 = vmatprep.subr.mxu0 0.0
      %440 = vmatpush1.msra.mxu0 %v416
      %441 = vmatprep.subr.mxu0 0.0
      %442 = vmatpush1.msra.mxu0 %v417
      %443 = vmatprep.subr.mxu0 0.0
      %444 = vmatpush1.msra.mxu0 %v418
      %445 = vmatprep.subr.mxu0 0.0
      %446 = vmatpush1.msra.mxu0 %v419
      %447 = vmatprep.subr.mxu0 0.0
      %448 = vmatpush1.msra.mxu0 %v420
      %449 = vmatprep.subr.mxu0 0.0
      %450 = vmatpush1.msra.mxu0 %v421
      %451 = vmatprep.subr.mxu0 0.0
      %452 = vmatpush1.msra.mxu0 %v422
      %453 = vmatprep.subr.mxu0 0.0
      %454 = vmatpush1.msra.mxu0 0.0
      %455 = vmatprep.subr.mxu0 0.0
      %456 = vmatpush1.msra.mxu0 0.0
      %457 = vmatprep.subr.mxu0 0.0
      %458 = vmatpush1.msra.mxu0 0.0
      %459 = vmatprep.subr.mxu0 0.0
      %460 = vmatpush1.msra.mxu0 0.0
      %461 = vmatprep.subr.mxu0 0.0
      %462 = vmatpush1.msra.mxu0 0.0
      %463 = vmatprep.subr.mxu0 0.0
      %464 = vmatpush1.msra.mxu0 0.0
      %465 = vmatprep.subr.mxu0 0.0
      %466 = vmatpush1.msra.mxu0 0.0
      %467 = vmatprep.subr.mxu0 0.0
      %468 = vmatpush1.msra.mxu0 0.0
      %469 = vmatprep.subr.mxu0 0.0
      %470 = vmatpush1.msra.mxu0 0.0
      %471 = vmatprep.subr.mxu0 0.0
      %472 = vmatpush1.msra.mxu0 0.0
      %473 = vmatprep.subr.mxu0 0.0
      %474 = vmatpush1.msra.mxu0 0.0
      %475 = vmatprep.subr.mxu0 0.0
      %476 = vmatpush1.msra.mxu0 0.0
      %477 = vmatprep.subr.mxu0 0.0
      %478 = vmatpush1.msra.mxu0 0.0
      %479 = vmatprep.subr.mxu0 0.0
      %480 = vmatpush1.msra.mxu0 0.0
      %481 = vmatprep.subr.mxu0 0.0
      %482 = vmatpush1.msra.mxu0 0.0
      %483 = vmatprep.subr.mxu0 0.0
      %484 = vmatpush1.msra.mxu0 0.0
      %485 = vmatprep.subr.mxu0 0.0
      %486 = vmatpush1.msra.mxu0 0.0
      %487 = vmatprep.subr.mxu0 0.0
      %488 = vmatpush1.msra.mxu0 0.0
      %489 = vmatprep.subr.mxu0 0.0
      %490 = vmatpush1.msra.mxu0 0.0
      %491 = vmatprep.subr.mxu0 0.0
      %492 = vmatpush1.msra.mxu0 0.0
      %493 = vmatprep.subr.mxu0 0.0
      %494 = vmatpush1.msra.mxu0 0.0
      %495 = vmatprep.subr.mxu0 0.0
      %496 = vmatpush1.msra.mxu0 0.0
      %497 = vmatprep.subr.mxu0 0.0
      %498 = vmatpush1.msra.mxu0 0.0
      %499 = vmatprep.subr.mxu0 0.0
      %500 = vmatpush1.msra.mxu0 0.0
      %501 = vmatprep.mubr.f32.mxu0 0.0
      %502 = vmatmul.mubr.f32.gmra.mrb[0].mxu0 %v432
      %v503 = vpop.f32.mrb[0].mxu0
      %v504 = vadd.f32 %v428, %v503
      %v505 = vpop.f32.mrb[0].mxu0
      %506 = vmatprep.mubr.f32.mxu0 0.0
      %507 = vmatmul.mubr.f32.gmra.mrb[0].mxu0 %v435
      %v508 = vpop.f32.mrb[0].mxu0
      %v509 = vadd.f32 %v428, %v508
      %v510 = vpop.f32.mrb[0].mxu0
      %511 = vdwg.mxu0
      %v512 = vmax.f32 %v504, 0.0
      %v513 = vmax.f32 %v509, 0.0
      %v514 = vld [vmem:[%s5] sm:$0xff]
      %v515 = vld [vmem:[%s5 + $0x8] sm:$0xff]
      %v516 = vld [vmem:[%s5 + $0x10] sm:$0xff]
      %v517 = vld [vmem:[%s5 + $0x18] sm:$0xff]
      %v518 = vld [vmem:[%s5 + $0x20] sm:$0xff]
      %v519 = vld [vmem:[%s5 + $0x28] sm:$0xff]
      %v520 = vld [vmem:[%s5 + $0x30] sm:$0xff]
      %v521 = vld [vmem:[%s5 + $0x38] sm:$0xff]
      %v522 = vld [vmem:[%s5 + $0x40] sm:$0xff]
      %v523 = vld [vmem:[%s5 + $0x48] sm:$0xff]
      %v524 = vld [vmem:[%s5 + $0x50] sm:$0xff]
      %v525 = vld [vmem:[%s5 + $0x58] sm:$0xff]
      %v526 = vld [vmem:[%s5 + $0x60] sm:$0xff]
      %v527 = vld [vmem:[%s5 + $0x68] sm:$0xff]
      %v528 = vld [vmem:[%s5 + $0x70] sm:$0xff]
      %v529 = vld [vmem:[%s5 + $0x78] sm:$0xff]
      %v530 = vld [vmem:[%s5 + $0x80] sm:$0xff]
      %v531 = vld [vmem:[%s5 + $0x88] sm:$0xff]
      %v532 = vld [vmem:[%s5 + $0x90] sm:$0xff]
      %v533 = vld [vmem:[%s5 + $0x98] sm:$0xff]
      %v534 = vld [vmem:[%s5 + $0xa0] sm:$0xff]
      %v535 = vld [vmem:[%s5 + $0xa8] sm:$0xff]
      %v536 = vld [vmem:[%s5 + $0xb0] sm:$0xff]
      %v537 = vld [vmem:[%s5 + $0xb8] sm:$0xff]
      %v538 = vld [vmem:[%s5 + $0xc0] sm:$0xff]
      %v539 = vld [vmem:[%s5 + $0xc8] sm:$0xff]
      %v540 = vld [vmem:[%s5 + $0xd0] sm:$0xff]
      %v541 = vld [vmem:[%s5 + $0xd8] sm:$0xff]
      %v542 = vld [vmem:[%s5 + $0xe0] sm:$0xff]
      %v543 = vld [vmem:[%s5 + $0xe8] sm:$0xff]
      %v544 = vld [vmem:[%s5 + $0xf0] sm:$0xff]
      %v545 = vld [vmem:[%s5 + $0xf8] sm:$0xff]
      %v546 = vld [vmem:[%s5 + $0x100] sm:$0xff]
      %v547 = vld [vmem:[%s5 + $0x108] sm:$0xff]
      %v548 = vld [vmem:[%s5 + $0x110] sm:$0xff]
      %v549 = vld [vmem:[%s5 + $0x118] sm:$0xff]
      %v550 = vld [vmem:[%s5 + $0x120] sm:$0xff]
      %v551 = vld [vmem:[%s5 + $0x128] sm:$0xff]
      %v552 = vld [vmem:[%s5 + $0x130] sm:$0xff]
      %v553 = vld [vmem:[%s5 + $0x138] sm:$0xff]
      %v554 = vld [vmem:[%s5 + $0x140] sm:$0xff]
      %v555 = vld [vmem:[%s5 + $0x148] sm:$0xff]
      %v556 = vld [vmem:[%s5 + $0x150] sm:$0xff]
      %v557 = vld [vmem:[%s5 + $0x158] sm:$0xff]
      %v558 = vld [vmem:[%s5 + $0x160] sm:$0xff]
      %v559 = vld [vmem:[%s5 + $0x168] sm:$0xff]
      %v560 = vld [vmem:[%s5 + $0x170] sm:$0xff]
      %v561 = vld [vmem:[%s5 + $0x178] sm:$0xff]
      %v562 = vld [vmem:[%s5 + $0x180] sm:$0xff]
      %v563 = vld [vmem:[%s5 + $0x188] sm:$0xff]
      %v564 = vld [vmem:[%s5 + $0x190] sm:$0xff]
      %v565 = vld [vmem:[%s5 + $0x198] sm:$0xff]
      %v566 = vld [vmem:[%s5 + $0x1a0] sm:$0xff]
      %v567 = vld [vmem:[%s5 + $0x1a8] sm:$0xff]
      %v568 = vld [vmem:[%s5 + $0x1b0] sm:$0xff]
      %v569 = vld [vmem:[%s5 + $0x1b8] sm:$0xff]
      %v570 = vld [vmem:[%s5 + $0x1c0] sm:$0xff]
      %v571 = vld [vmem:[%s5 + $0x1c8] sm:$0xff]
      %v572 = vld [vmem:[%s5 + $0x1d0] sm:$0xff]
      %v573 = vld [vmem:[%s5 + $0x1d8] sm:$0xff]
      %v574 = vld [vmem:[%s5 + $0x1e0] sm:$0xff]
      %v575 = vld [vmem:[%s5 + $0x1e8] sm:$0xff]
      %v576 = vld [vmem:[%s5 + $0x1f0] sm:$0xff]
      %v577 = vld [vmem:[%s5 + $0x1f8] sm:$0xff]
      %v578 = vld [vmem:[%s5 + $0x200] sm:$0xff]
      %v579 = vld [vmem:[%s5 + $0x208] sm:$0xff]
      %v580 = vld [vmem:[%s5 + $0x210] sm:$0xff]
      %v581 = vld [vmem:[%s5 + $0x218] sm:$0xff]
      %v582 = vld [vmem:[%s5 + $0x220] sm:$0xff]
      %v583 = vld [vmem:[%s5 + $0x228] sm:$0xff]
      %v584 = vld [vmem:[%s5 + $0x230] sm:$0xff]
      %v585 = vld [vmem:[%s5 + $0x238] sm:$0xff]
      %v586 = vld [vmem:[%s5 + $0x240] sm:$0xff]
      %v587 = vld [vmem:[%s5 + $0x248] sm:$0xff]
      %v588 = vld [vmem:[%s5 + $0x250] sm:$0xff]
      %v589 = vld [vmem:[%s5 + $0x258] sm:$0xff]
      %v590 = vld [vmem:[%s5 + $0x260] sm:$0xff]
      %v591 = vld [vmem:[%s5 + $0x268] sm:$0xff]
      %v592 = vld [vmem:[%s5 + $0x270] sm:$0xff]
      %v593 = vld [vmem:[%s5 + $0x278] sm:$0xff]
      %v594 = vld [vmem:[%s5 + $0x280] sm:$0xff]
      %v595 = vld [vmem:[%s5 + $0x288] sm:$0xff]
      %v596 = vld [vmem:[%s5 + $0x290] sm:$0xff]
      %v597 = vld [vmem:[%s5 + $0x298] sm:$0xff]
      %v598 = vld [vmem:[%s5 + $0x2a0] sm:$0xff]
      %v599 = vld [vmem:[%s5 + $0x2a8] sm:$0xff]
      %v600 = vld [vmem:[%s5 + $0x2b0] sm:$0xff]
      %v601 = vld [vmem:[%s5 + $0x2b8] sm:$0xff]
      %v602 = vld [vmem:[%s5 + $0x2c0] sm:$0xff]
      %v603 = vld [vmem:[%s5 + $0x2c8] sm:$0xff]
      %v604 = vld [vmem:[%s5 + $0x2d0] sm:$0xff]
      %v605 = vld [vmem:[%s5 + $0x2d8] sm:$0xff]
      %v606 = vld [vmem:[%s5 + $0x2e0] sm:$0xff]
      %v607 = vld [vmem:[%s5 + $0x2e8] sm:$0xff]
      %v608 = vld [vmem:[%s5 + $0x2f0] sm:$0xff]
      %v609 = vld [vmem:[%s5 + $0x2f8] sm:$0xff]
      %v610 = vld [vmem:[%s5 + $0x300] sm:$0xff]
      %v611 = vld [vmem:[%s5 + $0x308] sm:$0xff]
      %v612 = vld [vmem:[%s5 + $0x310] sm:$0xff]
      %v613 = vld [vmem:[%s5 + $0x318] sm:$0xff]
      %v614 = vld [vmem:[%s5 + $0x320] sm:$0xff]
      %v615 = vld [vmem:[%s5 + $0x328] sm:$0xff]
      %v616 = vld [vmem:[%s5 + $0x330] sm:$0xff]
      %v617 = vld [vmem:[%s5 + $0x338] sm:$0xff]
      %v618 = vld [vmem:[%s5 + $0x340] sm:$0xff]
      %v619 = vld [vmem:[%s5 + $0x348] sm:$0xff]
      %v620 = vld [vmem:[%s5 + $0x350] sm:$0xff]
      %v621 = vld [vmem:[%s5 + $0x358] sm:$0xff]
      %v622 = vld [vmem:[%s5 + $0x360] sm:$0xff]
      %v623 = vld [vmem:[%s5 + $0x368] sm:$0xff]
      %v624 = vld [vmem:[%s5 + $0x370] sm:$0xff]
      %v625 = vld [vmem:[%s5 + $0x378] sm:$0xff]
      %v626 = vld [vmem:[%s5 + $0x380] sm:$0xff]
      %v627 = vld [vmem:[%s5 + $0x388] sm:$0xff]
      %v628 = vld [vmem:[%s5 + $0x390] sm:$0xff]
      %v629 = vld [vmem:[%s5 + $0x398] sm:$0xff]
      %v630 = vld [vmem:[%s5 + $0x3a0] sm:$0xff]
      %v631 = vld [vmem:[%s5 + $0x3a8] sm:$0xff]
      %v632 = vld [vmem:[%s5 + $0x3b0] sm:$0xff]
      %v633 = vld [vmem:[%s5 + $0x3b8] sm:$0xff]
      %v634 = vld [vmem:[%s5 + $0x3c0] sm:$0xff]
      %v635 = vld [vmem:[%s5 + $0x3c8] sm:$0xff]
      %v636 = vld [vmem:[%s5 + $0x3d0] sm:$0xff]
      %v637 = vld [vmem:[%s5 + $0x3d8] sm:$0xff]
      %v638 = vld [vmem:[%s5 + $0x3e0] sm:$0xff]
      %v639 = vld [vmem:[%s5 + $0x3e8] sm:$0xff]
      %v640 = vld [vmem:[%s5 + $0x3f0] sm:$0xff]
      %v641 = vld [vmem:[%s5 + $0x3f8] sm:$0xff]
      %v642 = vld [vmem:[%s6] sm:$0xff]
      %v644 = vlaneseq
      %v645 = vshrl.u32 %v644, 7
      %v646 = vsub.s32 0, %v645
      %v647 = vrot.slane %v642, %v646
      %v648 = vlaneseq
      %v649 = vshrl.u32 %v648, 7
      %v650 = vsub.s32 1, %v649
      %v651 = vrot.slane %v642, %v650
      %v652 = vlaneseq
      %v653 = vshrl.u32 %v652, 7
      %v654 = vsub.s32 2, %v653
      %v655 = vrot.slane %v642, %v654
      %v656 = vlaneseq
      %v657 = vshrl.u32 %v656, 7
      %v658 = vsub.s32 3, %v657
      %v659 = vrot.slane %v642, %v658
      %v660 = vlaneseq
      %v661 = vshrl.u32 %v660, 7
      %v662 = vsub.s32 4, %v661
      %v663 = vrot.slane %v642, %v662
      %v664 = vlaneseq
      %v665 = vshrl.u32 %v664, 7
      %v666 = vsub.s32 5, %v665
      %v667 = vrot.slane %v642, %v666
      %v668 = vlaneseq
      %v669 = vshrl.u32 %v668, 7
      %v670 = vsub.s32 6, %v669
      %v671 = vrot.slane %v642, %v670
      %v672 = vlaneseq
      %v673 = vshrl.u32 %v672, 7
      %v674 = vsub.s32 7, %v673
      %v675 = vrot.slane %v642, %v674
      %684 = vmatprep.subr.mxu0 %v515
      %685 = vmatpush1.msra.mxu0 %v514
      %686 = vmatprep.subr.mxu0 %v523
      %687 = vmatpush1.msra.mxu0 %v522
      %688 = vmatprep.subr.mxu0 %v531
      %689 = vmatpush1.msra.mxu0 %v530
      %690 = vmatprep.subr.mxu0 %v539
      %691 = vmatpush1.msra.mxu0 %v538
      %692 = vmatprep.subr.mxu0 %v547
      %693 = vmatpush1.msra.mxu0 %v546
      %694 = vmatprep.subr.mxu0 %v555
      %695 = vmatpush1.msra.mxu0 %v554
      %696 = vmatprep.subr.mxu0 %v563
      %697 = vmatpush1.msra.mxu0 %v562
      %698 = vmatprep.subr.mxu0 %v571
      %699 = vmatpush1.msra.mxu0 %v570
      %700 = vmatprep.subr.mxu0 %v579
      %701 = vmatpush1.msra.mxu0 %v578
      %702 = vmatprep.subr.mxu0 %v587
      %703 = vmatpush1.msra.mxu0 %v586
      %704 = vmatprep.subr.mxu0 %v595
      %705 = vmatpush1.msra.mxu0 %v594
      %706 = vmatprep.subr.mxu0 %v603
      %707 = vmatpush1.msra.mxu0 %v602
      %708 = vmatprep.subr.mxu0 %v611
      %709 = vmatpush1.msra.mxu0 %v610
      %710 = vmatprep.subr.mxu0 %v619
      %711 = vmatpush1.msra.mxu0 %v618
      %712 = vmatprep.subr.mxu0 %v627
      %713 = vmatpush1.msra.mxu0 %v626
      %714 = vmatprep.subr.mxu0 %v635
      %715 = vmatpush1.msra.mxu0 %v634
      %716 = vmatprep.subr.mxu0 0.0
      %717 = vmatpush1.msra.mxu0 0.0
      %718 = vmatprep.subr.mxu0 0.0
      %719 = vmatpush1.msra.mxu0 0.0
      %720 = vmatprep.subr.mxu0 0.0
      %721 = vmatpush1.msra.mxu0 0.0
      %722 = vmatprep.subr.mxu0 0.0
      %723 = vmatpush1.msra.mxu0 0.0
      %724 = vmatprep.subr.mxu0 0.0
      %725 = vmatpush1.msra.mxu0 0.0
      %726 = vmatprep.subr.mxu0 0.0
      %727 = vmatpush1.msra.mxu0 0.0
      %728 = vmatprep.subr.mxu0 0.0
      %729 = vmatpush1.msra.mxu0 0.0
      %730 = vmatprep.subr.mxu0 0.0
      %731 = vmatpush1.msra.mxu0 0.0
      %732 = vmatprep.subr.mxu0 0.0
      %733 = vmatpush1.msra.mxu0 0.0
      %734 = vmatprep.subr.mxu0 0.0
      %735 = vmatpush1.msra.mxu0 0.0
      %736 = vmatprep.subr.mxu0 0.0
      %737 = vmatpush1.msra.mxu0 0.0
      %738 = vmatprep.subr.mxu0 0.0
      %739 = vmatpush1.msra.mxu0 0.0
      %740 = vmatprep.subr.mxu0 0.0
      %741 = vmatpush1.msra.mxu0 0.0
      %742 = vmatprep.subr.mxu0 0.0
      %743 = vmatpush1.msra.mxu0 0.0
      %744 = vmatprep.subr.mxu0 0.0
      %745 = vmatpush1.msra.mxu0 0.0
      %746 = vmatprep.subr.mxu0 0.0
      %747 = vmatpush1.msra.mxu0 0.0
      %748 = vmatprep.mubr.f32.mxu0 0.0
      %749 = vmatmul.mubr.f32.gmra.mrb[0].mxu0 %v512
      %v750 = vpop.f32.mrb[0].mxu0
      %v751 = vadd.f32 %v647, %v750
      %v752 = vpop.f32.mrb[0].mxu0
      %v753 = vadd.f32 %v651, %v752
      %754 = vmatprep.mubr.f32.mxu0 0.0
      %755 = vmatmul.mubr.f32.gmra.mrb[0].mxu0 %v513
      %v756 = vpop.f32.mrb[0].mxu0
      %v757 = vadd.f32 %v647, %v756
      %v758 = vpop.f32.mrb[0].mxu0
      %v759 = vadd.f32 %v651, %v758
      %760 = vdwg.mxu0
      %761 = vmatprep.subr.mxu0 %v517
      %762 = vmatpush1.msra.mxu0 %v516
      %763 = vmatprep.subr.mxu0 %v525
      %764 = vmatpush1.msra.mxu0 %v524
      %765 = vmatprep.subr.mxu0 %v533
      %766 = vmatpush1.msra.mxu0 %v532
      %767 = vmatprep.subr.mxu0 %v541
      %768 = vmatpush1.msra.mxu0 %v540
      %769 = vmatprep.subr.mxu0 %v549
      %770 = vmatpush1.msra.mxu0 %v548
      %771 = vmatprep.subr.mxu0 %v557
      %772 = vmatpush1.msra.mxu0 %v556
      %773 = vmatprep.subr.mxu0 %v565
      %774 = vmatpush1.msra.mxu0 %v564
      %775 = vmatprep.subr.mxu0 %v573
      %776 = vmatpush1.msra.mxu0 %v572
      %777 = vmatprep.subr.mxu0 %v581
      %778 = vmatpush1.msra.mxu0 %v580
      %779 = vmatprep.subr.mxu0 %v589
      %780 = vmatpush1.msra.mxu0 %v588
      %781 = vmatprep.subr.mxu0 %v597
      %782 = vmatpush1.msra.mxu0 %v596
      %783 = vmatprep.subr.mxu0 %v605
      %784 = vmatpush1.msra.mxu0 %v604
      %785 = vmatprep.subr.mxu0 %v613
      %786 = vmatpush1.msra.mxu0 %v612
      %787 = vmatprep.subr.mxu0 %v621
      %788 = vmatpush1.msra.mxu0 %v620
      %789 = vmatprep.subr.mxu0 %v629
      %790 = vmatpush1.msra.mxu0 %v628
      %791 = vmatprep.subr.mxu0 %v637
      %792 = vmatpush1.msra.mxu0 %v636
      %793 = vmatprep.subr.mxu0 0.0
      %794 = vmatpush1.msra.mxu0 0.0
      %795 = vmatprep.subr.mxu0 0.0
      %796 = vmatpush1.msra.mxu0 0.0
      %797 = vmatprep.subr.mxu0 0.0
      %798 = vmatpush1.msra.mxu0 0.0
      %799 = vmatprep.subr.mxu0 0.0
      %800 = vmatpush1.msra.mxu0 0.0
      %801 = vmatprep.subr.mxu0 0.0
      %802 = vmatpush1.msra.mxu0 0.0
      %803 = vmatprep.subr.mxu0 0.0
      %804 = vmatpush1.msra.mxu0 0.0
      %805 = vmatprep.subr.mxu0 0.0
      %806 = vmatpush1.msra.mxu0 0.0
      %807 = vmatprep.subr.mxu0 0.0
      %808 = vmatpush1.msra.mxu0 0.0
      %809 = vmatprep.subr.mxu0 0.0
      %810 = vmatpush1.msra.mxu0 0.0
      %811 = vmatprep.subr.mxu0 0.0
      %812 = vmatpush1.msra.mxu0 0.0
      %813 = vmatprep.subr.mxu0 0.0
      %814 = vmatpush1.msra.mxu0 0.0
      %815 = vmatprep.subr.mxu0 0.0
      %816 = vmatpush1.msra.mxu0 0.0
      %817 = vmatprep.subr.mxu0 0.0
      %818 = vmatpush1.msra.mxu0 0.0
      %819 = vmatprep.subr.mxu0 0.0
      %820 = vmatpush1.msra.mxu0 0.0
      %821 = vmatprep.subr.mxu0 0.0
      %822 = vmatpush1.msra.mxu0 0.0
      %823 = vmatprep.subr.mxu0 0.0
      %824 = vmatpush1.msra.mxu0 0.0
      %825 = vmatprep.mubr.f32.mxu0 0.0
      %826 = vmatmul.mubr.f32.gmra.mrb[0].mxu0 %v512
      %v827 = vpop.f32.mrb[0].mxu0
      %v828 = vadd.f32 %v655, %v827
      %v829 = vpop.f32.mrb[0].mxu0
      %v830 = vadd.f32 %v659, %v829
      %831 = vmatprep.mubr.f32.mxu0 0.0
      %832 = vmatmul.mubr.f32.gmra.mrb[0].mxu0 %v513
      %v833 = vpop.f32.mrb[0].mxu0
      %v834 = vadd.f32 %v655, %v833
      %v835 = vpop.f32.mrb[0].mxu0
      %v836 = vadd.f32 %v659, %v835
      %837 = vdwg.mxu0
      %838 = vmatprep.subr.mxu0 %v519
      %839 = vmatpush1.msra.mxu0 %v518
      %840 = vmatprep.subr.mxu0 %v527
      %841 = vmatpush1.msra.mxu0 %v526
      %842 = vmatprep.subr.mxu0 %v535
      %843 = vmatpush1.msra.mxu0 %v534
      %844 = vmatprep.subr.mxu0 %v543
      %845 = vmatpush1.msra.mxu0 %v542
      %846 = vmatprep.subr.mxu0 %v551
      %847 = vmatpush1.msra.mxu0 %v550
      %848 = vmatprep.subr.mxu0 %v559
      %849 = vmatpush1.msra.mxu0 %v558
      %850 = vmatprep.subr.mxu0 %v567
      %851 = vmatpush1.msra.mxu0 %v566
      %852 = vmatprep.subr.mxu0 %v575
      %853 = vmatpush1.msra.mxu0 %v574
      %854 = vmatprep.subr.mxu0 %v583
      %855 = vmatpush1.msra.mxu0 %v582
      %856 = vmatprep.subr.mxu0 %v591
      %857 = vmatpush1.msra.mxu0 %v590
      %858 = vmatprep.subr.mxu0 %v599
      %859 = vmatpush1.msra.mxu0 %v598
      %860 = vmatprep.subr.mxu0 %v607
      %861 = vmatpush1.msra.mxu0 %v606
      %862 = vmatprep.subr.mxu0 %v615
      %863 = vmatpush1.msra.mxu0 %v614
      %864 = vmatprep.subr.mxu0 %v623
      %865 = vmatpush1.msra.mxu0 %v622
      %866 = vmatprep.subr.mxu0 %v631
      %867 = vmatpush1.msra.mxu0 %v630
      %868 = vmatprep.subr.mxu0 %v639
      %869 = vmatpush1.msra.mxu0 %v638
      %870 = vmatprep.subr.mxu0 0.0
      %871 = vmatpush1.msra.mxu0 0.0
      %872 = vmatprep.subr.mxu0 0.0
      %873 = vmatpush1.msra.mxu0 0.0
      %874 = vmatprep.subr.mxu0 0.0
      %875 = vmatpush1.msra.mxu0 0.0
      %876 = vmatprep.subr.mxu0 0.0
      %877 = vmatpush1.msra.mxu0 0.0
      %878 = vmatprep.subr.mxu0 0.0
      %879 = vmatpush1.msra.mxu0 0.0
      %880 = vmatprep.subr.mxu0 0.0
      %881 = vmatpush1.msra.mxu0 0.0
      %882 = vmatprep.subr.mxu0 0.0
      %883 = vmatpush1.msra.mxu0 0.0
      %884 = vmatprep.subr.mxu0 0.0
      %885 = vmatpush1.msra.mxu0 0.0
      %886 = vmatprep.subr.mxu0 0.0
      %887 = vmatpush1.msra.mxu0 0.0
      %888 = vmatprep.subr.mxu0 0.0
      %889 = vmatpush1.msra.mxu0 0.0
      %890 = vmatprep.subr.mxu0 0.0
      %891 = vmatpush1.msra.mxu0 0.0
      %892 = vmatprep.subr.mxu0 0.0
      %893 = vmatpush1.msra.mxu0 0.0
      %894 = vmatprep.subr.mxu0 0.0
      %895 = vmatpush1.msra.mxu0 0.0
      %896 = vmatprep.subr.mxu0 0.0
      %897 = vmatpush1.msra.mxu0 0.0
      %898 = vmatprep.subr.mxu0 0.0
      %899 = vmatpush1.msra.mxu0 0.0
      %900 = vmatprep.subr.mxu0 0.0
      %901 = vmatpush1.msra.mxu0 0.0
      %902 = vmatprep.mubr.f32.mxu0 0.0
      %903 = vmatmul.mubr.f32.gmra.mrb[0].mxu0 %v512
      %v904 = vpop.f32.mrb[0].mxu0
      %v905 = vadd.f32 %v663, %v904
      %v906 = vpop.f32.mrb[0].mxu0
      %v907 = vadd.f32 %v667, %v906
      %908 = vmatprep.mubr.f32.mxu0 0.0
      %909 = vmatmul.mubr.f32.gmra.mrb[0].mxu0 %v513
      %v910 = vpop.f32.mrb[0].mxu0
      %v911 = vadd.f32 %v663, %v910
      %v912 = vpop.f32.mrb[0].mxu0
      %v913 = vadd.f32 %v667, %v912
      %914 = vdwg.mxu0
      %915 = vmatprep.subr.mxu0 %v521
      %916 = vmatpush1.msra.mxu0 %v520
      %917 = vmatprep.subr.mxu0 %v529
      %918 = vmatpush1.msra.mxu0 %v528
      %919 = vmatprep.subr.mxu0 %v537
      %920 = vmatpush1.msra.mxu0 %v536
      %921 = vmatprep.subr.mxu0 %v545
      %922 = vmatpush1.msra.mxu0 %v544
      %923 = vmatprep.subr.mxu0 %v553
      %924 = vmatpush1.msra.mxu0 %v552
      %925 = vmatprep.subr.mxu0 %v561
      %926 = vmatpush1.msra.mxu0 %v560
      %927 = vmatprep.subr.mxu0 %v569
      %928 = vmatpush1.msra.mxu0 %v568
      %929 = vmatprep.subr.mxu0 %v577
      %930 = vmatpush1.msra.mxu0 %v576
      %931 = vmatprep.subr.mxu0 %v585
      %932 = vmatpush1.msra.mxu0 %v584
      %933 = vmatprep.subr.mxu0 %v593
      %934 = vmatpush1.msra.mxu0 %v592
      %935 = vmatprep.subr.mxu0 %v601
      %936 = vmatpush1.msra.mxu0 %v600
      %937 = vmatprep.subr.mxu0 %v609
      %938 = vmatpush1.msra.mxu0 %v608
      %939 = vmatprep.subr.mxu0 %v617
      %940 = vmatpush1.msra.mxu0 %v616
      %941 = vmatprep.subr.mxu0 %v625
      %942 = vmatpush1.msra.mxu0 %v624
      %943 = vmatprep.subr.mxu0 %v633
      %944 = vmatpush1.msra.mxu0 %v632
      %945 = vmatprep.subr.mxu0 %v641
      %946 = vmatpush1.msra.mxu0 %v640
      %947 = vmatprep.subr.mxu0 0.0
      %948 = vmatpush1.msra.mxu0 0.0
      %949 = vmatprep.subr.mxu0 0.0
      %950 = vmatpush1.msra.mxu0 0.0
      %951 = vmatprep.subr.mxu0 0.0
      %952 = vmatpush1.msra.mxu0 0.0
      %953 = vmatprep.subr.mxu0 0.0
      %954 = vmatpush1.msra.mxu0 0.0
      %955 = vmatprep.subr.mxu0 0.0
      %956 = vmatpush1.msra.mxu0 0.0
      %957 = vmatprep.subr.mxu0 0.0
      %958 = vmatpush1.msra.mxu0 0.0
      %959 = vmatprep.subr.mxu0 0.0
      %960 = vmatpush1.msra.mxu0 0.0
      %961 = vmatprep.subr.mxu0 0.0
      %962 = vmatpush1.msra.mxu0 0.0
      %963 = vmatprep.subr.mxu0 0.0
      %964 = vmatpush1.msra.mxu0 0.0
      %965 = vmatprep.subr.mxu0 0.0
      %966 = vmatpush1.msra.mxu0 0.0
      %967 = vmatprep.subr.mxu0 0.0
      %968 = vmatpush1.msra.mxu0 0.0
      %969 = vmatprep.subr.mxu0 0.0
      %970 = vmatpush1.msra.mxu0 0.0
      %971 = vmatprep.subr.mxu0 0.0
      %972 = vmatpush1.msra.mxu0 0.0
      %973 = vmatprep.subr.mxu0 0.0
      %974 = vmatpush1.msra.mxu0 0.0
      %975 = vmatprep.subr.mxu0 0.0
      %976 = vmatpush1.msra.mxu0 0.0
      %977 = vmatprep.subr.mxu0 0.0
      %978 = vmatpush1.msra.mxu0 0.0
      %979 = vmatprep.mubr.f32.mxu0 0.0
      %980 = vmatmul.mubr.f32.gmra.mrb[0].mxu0 %v512
      %v981 = vpop.f32.mrb[0].mxu0
      %v982 = vadd.f32 %v671, %v981
      %v983 = vpop.f32.mrb[0].mxu0
      %v984 = vadd.f32 %v675, %v983
      %985 = vmatprep.mubr.f32.mxu0 0.0
      %986 = vmatmul.mubr.f32.gmra.mrb[0].mxu0 %v513
      %v987 = vpop.f32.mrb[0].mxu0
      %v988 = vadd.f32 %v671, %v987
      %v989 = vpop.f32.mrb[0].mxu0
      %v990 = vadd.f32 %v675, %v989
      %991 = vdwg.mxu0
      %v992 = vmax.f32 %v751, %v757
      %v993 = vmax.f32 %v753, %v759
      %v994 = vmax.f32 %v828, %v834
      %v995 = vmax.f32 %v830, %v836
      %v996 = vmax.f32 %v905, %v911
      %v997 = vmax.f32 %v907, %v913
      %v998 = vmax.f32 %v982, %v988
      %v999 = vmax.f32 %v984, %v990
      %v1000 = vld [vmem:[#allocation2] sm:$0xff]
      %v1001 = vld [vmem:[#allocation2 + $0x8] sm:$0xff]
      %v1002 = vld [vmem:[#allocation2 + $0x10] sm:$0xff]
      %v1003 = vld [vmem:[#allocation2 + $0x18] sm:$0xff]
      %v1004 = vld [vmem:[#allocation2 + $0x20] sm:$0xff]
      %v1005 = vld [vmem:[#allocation2 + $0x28] sm:$0xff]
      %v1006 = vld [vmem:[#allocation2 + $0x30] sm:$0xff]
      %v1007 = vld [vmem:[#allocation2 + $0x38] sm:$0xff]
      %v1008 = vmax.f32 %v1000, %v992
      %v1009 = vmax.f32 %v1001, %v993
      %v1010 = vmax.f32 %v1002, %v994
      %v1011 = vmax.f32 %v1003, %v995
      %v1012 = vmax.f32 %v1004, %v996
      %v1013 = vmax.f32 %v1005, %v997
      %v1014 = vmax.f32 %v1006, %v998
      %v1015 = vmax.f32 %v1007, %v999
      %1016 = vst [vmem:[#allocation2] sm:$0xff] %v1008
      %1017 = vst [vmem:[#allocation2 + $0x8] sm:$0xff] %v1009
      %1018 = vst [vmem:[#allocation2 + $0x10] sm:$0xff] %v1010
      %1019 = vst [vmem:[#allocation2 + $0x18] sm:$0xff] %v1011
      %1020 = vst [vmem:[#allocation2 + $0x20] sm:$0xff] %v1012
      %1021 = vst [vmem:[#allocation2 + $0x28] sm:$0xff] %v1013
      %1022 = vst [vmem:[#allocation2 + $0x30] sm:$0xff] %v1014
      %1023 = vst [vmem:[#allocation2 + $0x38] sm:$0xff] %v1015
      // Predicated region
      $region53: #{pointnet_cls_forward.3} parent=47 // pred_check
        %p1024 = pneg %p305
      $region54: #{pointnet_cls_forward.3} parent=47 // pred_check_branch
        %1026 = sbr.rel (%p1024) target = $region56
      $region55: #{pointnet_cls_forward.3} parent=47 // pred_region
        %v1027 = vld [vmem:[#allocation2] sm:$0xff]
        %v1028 = vld [vmem:[#allocation2 + $0x8] sm:$0xff]
        %v1029 = vld [vmem:[#allocation2 + $0x10] sm:$0xff]
        %v1030 = vld [vmem:[#allocation2 + $0x18] sm:$0xff]
        %v1031 = vld [vmem:[#allocation2 + $0x20] sm:$0xff]
        %v1032 = vld [vmem:[#allocation2 + $0x28] sm:$0xff]
        %v1033 = vld [vmem:[#allocation2 + $0x30] sm:$0xff]
        %v1034 = vld [vmem:[#allocation2 + $0x38] sm:$0xff]
        %v1035 = vrot.slane %v1027, 4
        %v1036 = vmax.f32 %v1027, %v1035
        %v1037 = vrot.slane %v1036, 2
        %v1038 = vmax.f32 %v1036, %v1037
        %v1039 = vrot.slane %v1038, 1
        %v1040 = vmax.f32 %v1038, %v1039
        %v1041 = vrot.slane %v1028, 4
        %v1042 = vmax.f32 %v1028, %v1041
        %v1043 = vrot.slane %v1042, 2
        %v1044 = vmax.f32 %v1042, %v1043
        %v1045 = vrot.slane %v1044, 1
        %v1046 = vmax.f32 %v1044, %v1045
        %v1047 = vrot.slane %v1029, 4
        %v1048 = vmax.f32 %v1029, %v1047
        %v1049 = vrot.slane %v1048, 2
        %v1050 = vmax.f32 %v1048, %v1049
        %v1051 = vrot.slane %v1050, 1
        %v1052 = vmax.f32 %v1050, %v1051
        %v1053 = vrot.slane %v1030, 4
        %v1054 = vmax.f32 %v1030, %v1053
        %v1055 = vrot.slane %v1054, 2
        %v1056 = vmax.f32 %v1054, %v1055
        %v1057 = vrot.slane %v1056, 1
        %v1058 = vmax.f32 %v1056, %v1057
        %v1059 = vrot.slane %v1031, 4
        %v1060 = vmax.f32 %v1031, %v1059
        %v1061 = vrot.slane %v1060, 2
        %v1062 = vmax.f32 %v1060, %v1061
        %v1063 = vrot.slane %v1062, 1
        %v1064 = vmax.f32 %v1062, %v1063
        %v1065 = vrot.slane %v1032, 4
        %v1066 = vmax.f32 %v1032, %v1065
        %v1067 = vrot.slane %v1066, 2
        %v1068 = vmax.f32 %v1066, %v1067
        %v1069 = vrot.slane %v1068, 1
        %v1070 = vmax.f32 %v1068, %v1069
        %v1071 = vrot.slane %v1033, 4
        %v1072 = vmax.f32 %v1033, %v1071
        %v1073 = vrot.slane %v1072, 2
        %v1074 = vmax.f32 %v1072, %v1073
        %v1075 = vrot.slane %v1074, 1
        %v1076 = vmax.f32 %v1074, %v1075
        %v1077 = vrot.slane %v1034, 4
        %v1078 = vmax.f32 %v1034, %v1077
        %v1079 = vrot.slane %v1078, 2
        %v1080 = vmax.f32 %v1078, %v1079
        %v1081 = vrot.slane %v1080, 1
        %v1082 = vmax.f32 %v1080, %v1081
        %v1091 = vcombine.low %v1040, %v1046
        %v1092 = vcombine.low %v1052, %v1058
        %v1093 = vcombine.low %v1064, %v1070
        %v1094 = vcombine.low %v1076, %v1082
        %v1096 = vunpack.c.l.s4 1966171168
        %v1097 = vunpack.c.0.s8 %v1096
        %v1098 = vlaneseq
        %v1099 = vshrl.u32 %v1098, 7
        %v1100 = vsub.s32 %v1097, %v1099
        %v1101 = vrot.slane %v1091, %v1100
        %v1103 = vunpack.c.l.s4 1966171168
        %v1104 = vunpack.c.0.s8 %v1103
        %v1105 = vlaneseq
        %v1106 = vshrl.u32 %v1105, 7
        %v1107 = vsub.s32 %v1104, %v1106
        %v1108 = vrot.slane %v1092, %v1107
        %v1110 = vunpack.c.l.s4 1966171168
        %v1111 = vunpack.c.0.s8 %v1110
        %v1112 = vlaneseq
        %v1113 = vshrl.u32 %v1112, 7
        %v1114 = vsub.s32 %v1111, %v1113
        %v1115 = vrot.slane %v1093, %v1114
        %v1117 = vunpack.c.l.s4 1966171168
        %v1118 = vunpack.c.0.s8 %v1117
        %v1119 = vlaneseq
        %v1120 = vshrl.u32 %v1119, 7
        %v1121 = vsub.s32 %v1118, %v1120
        %v1122 = vrot.slane %v1094, %v1121
        %v1123 = vcombine.low %v1101, %v1108
        %v1124 = vcombine.low %v1115, %v1122
        %v1126 = vunpack.c.l.s4 1966171168
        %v1127 = vunpack.c.0.s8 %v1126
        %v1128 = vlaneseq
        %v1129 = vshrl.u32 %v1128, 7
        %v1130 = vsub.s32 %v1127, %v1129
        %v1131 = vrot.slane %v1123, %v1130
        %v1133 = vunpack.c.l.s4 1966171168
        %v1134 = vunpack.c.0.s8 %v1133
        %v1135 = vlaneseq
        %v1136 = vshrl.u32 %v1135, 7
        %v1137 = vsub.s32 %v1134, %v1136
        %v1138 = vrot.slane %v1124, %v1137
        %v1139 = vcombine.low %v1131, %v1138
        %1141 = vst [vmem:[%s304] sm:$0xff] %v1139
      $region56: #{pointnet_cls_forward.3} parent=47 // pred_fallthru
        _
      %p1142 = scmp.lt.s32.totalorder %s22, 1
      %s1143 = scalar_select %p1142, %s22, 1
      %s1144 = smul.addr %s1143, 8
      %s1145 = scalar_lea.vmem %s7, %s1144
      // Predicated region
      $region57: #{pointnet_cls_forward.3} parent=47 // pred_check
        %p1146 = pneg %p202
      $region58: #{pointnet_cls_forward.3} parent=47 // pred_check_branch
        %1148 = sbr.rel (%p1146) target = $region60
      $region59: #{pointnet_cls_forward.3} parent=47 // pred_region
        _
      $region60: #{pointnet_cls_forward.3} parent=47 // pred_fallthru
        _
    $region48: #{pointnet_cls_forward.3} parent=5 // pred_fallthru
      _
    %p1149 = scmp.le.s32.totalorder 2, %s13
    // Predicated region
    $region61: #{pointnet_cls_forward.3} parent=5 // pred_check
      %p1150 = pneg %p1149
    $region62: #{pointnet_cls_forward.3} parent=5 // pred_check_branch
      %1152 = sbr.rel (%p1150) target = $region64
    $region63: #{pointnet_cls_forward.3} parent=5 // pred_region
      %s1153 = ssub.s32 %s13, 2
      // Predicated region
      $region65: #{pointnet_cls_forward.3} parent=63 // pred_check
        %p1154 = pneg %p208
      $region66: #{pointnet_cls_forward.3} parent=63 // pred_check_branch
        %1156 = sbr.rel (%p1154) target = $region68
      $region67: #{pointnet_cls_forward.3} parent=63 // pred_region
        %p1157 = scmp.lt.s32.totalorder %s24, 1
        %s1158 = scalar_select %p1157, %s24, 1
        %s1159 = smul.addr %s1158, 8
        %s1160 = scalar_lea.vmem %s7, %s1159
      $region68: #{pointnet_cls_forward.3} parent=63 // pred_fallthru
        _
    $region64: #{pointnet_cls_forward.3} parent=5 // pred_fallthru
      _
  $region6: #{pointnet_cls_forward.3} parent=0 // loop_footer
    %s17 = sadd.s32 1, %s13
  $region7: #{pointnet_cls_forward.3} parent=0 // loop_footer_branch
    %12 = sbr.rel target = $region3
  $region8: #{pointnet_cls_forward.3} parent=0 // loop_exit
    _

</llo_original>
